<compile_context>
chip_gen: v6e
topology: v6e:2x2x1
jax: 0.10.0
libtpu: 0.0.40
codegen_flags: <defaults>
</compile_context>

<pallas_src>
import jax
import jax.numpy as jnp
from jax.experimental import pallas as pl
from jax.experimental.pallas import tpu as pltpu

_ROW_UNROLL_MAX = 16  # static Python unroll of the row-pair loop up to this length


def _vmem_budget():
    """(vmem_limit_bytes, double-buffered block cap), generation aware."""
    try:
        phys = int(pltpu.get_tpu_info().vmem_capacity_bytes)
    except Exception:
        phys = 64 * 1024 * 1024  # conservative fallback (v7x per-core figure)
    if phys >= 96 * 1024 * 1024:                   # v5e / v6e: 128 MiB physical VMEM
        return 64 * 1024 * 1024, 12 * 1024 * 1024
    return 32 * 1024 * 1024, 6 * 1024 * 1024       # v7x: 64 MiB per TensorCore


def _choose_block_rows(hp, wp, c, batch, block_cap, out_itemsize):
    """Pick pooled-rows-per-block Rh.

    Legality (Mosaic minor-dim rule): the output block's minor dim Rh*Wp must be
    a multiple of 128, or Rh == Hp (full extent); the input block minor
    4*Rh*Wp is then automatically legal too.  Among legal choices, prefer the
    largest Rh whose double-buffered in+out blocks fit `block_cap` while still
    leaving enough grid steps for the v7x dual TensorCores + pipeline overlap.
    """
    def dbuf_bytes(rh):
        return 2 * (c * 4 * rh * wp * 4 + c * rh * wp * out_itemsize)

    legal = [rh for rh in range(1, hp) if (rh * wp) % 128 == 0]
    legal.append(hp)                                # full image rows: always legal
    legal = sorted(set(legal))
    fitting = [rh for rh in legal if dbuf_bytes(rh) <= block_cap] or [legal[0]]
    min_steps = 4 if batch < 4 else 2
    good = [rh for rh in fitting if batch * (-(-hp // rh)) >= min_steps]
    rh = max(good) if good else max(fitting)
    return rh, dbuf_bytes(rh)


def pool2d_pallas(x_nchw, conv_w, conv_b, *, win_norm=True, out_dtype=jnp.float32):
    """Pool2d forward.

    x_nchw: (B, C, H, W) f32; conv_w: (C, C) acting as
    logit[..., d] = sum_c x[..., c] * conv_w[c, d] + conv_b[d]; conv_b: (C,).
    Returns (B, C, H//2, W//2) in `out_dtype` (pass jnp.bfloat16 to halve
    output HBM traffic when the consumer accepts it).
    """
    B, C, H, W = x_nchw.shape
    # TODO(synk): only AvgPool2d(kernel_size=2, stride=2, padding=0) (the module
    # defaults) is supported; other kernel/stride/padding needs a different
    # pooling matrix / block geometry.
    assert H % 2 == 0 and W % 2 == 0, "2x2 / stride-2 pooling assumes even H, W"
    Hp, Wp = H // 2, W // 2

    vmem_limit, block_cap = _vmem_budget()
    rh, dbuf = _choose_block_rows(Hp, Wp, C, B, block_cap, jnp.dtype(out_dtype).itemsize)
    if dbuf + (2 << 20) > vmem_limit:               # oversized fallback block: raise limit
        vmem_limit = dbuf + (2 << 20)
    l_in, l_out = 2 * rh * W, rh * Wp
    grid = (B, pl.cdiv(Hp, rh))

    # Free, copy-less wrapper transforms (row-major reshapes; no transpose/cast of x).
    x3 = x_nchw.reshape(B, C, H * W)
    wct = jnp.transpose(conv_w).astype(jnp.float32)          # logit = wct @ x (channels-first)
    b2 = conv_b.reshape(C, 1).astype(jnp.float32)
    # 0/1 selection matrix folding the whole 2x2 window sum into one matmul: lane l of
    # a two-row slab [row 2i | row 2i+1] belongs to pooled column (l % W) // 2.
    p4 = ((jnp.arange(2 * W)[:, None] % W) // 2 == jnp.arange(Wp)[None, :]).astype(jnp.float32)

    def kernel(x_ref, wct_ref, b_ref, p4_ref, o_ref):
        wct_t = wct_ref[...]                                  # (C, C)
        p4_t = p4_ref[...]                                    # (2W, Wp)
        bias = jnp.broadcast_to(b_ref[...], (C, 2 * W))       # hoisted out of the row loop

        def row_pair(p, carry):
            # Input rows 2p, 2p+1 of this block: (C, 2W), channels on sublanes.
            xp = x_ref[:, pl.ds(2 * p * W, 2 * W)]
            # pool_module ("logit"): 1x1 conv over channels + sigmoid (f32 MXU + EUP).
            logit = jnp.dot(wct_t, xp, preferred_element_type=jnp.float32) + bias
            w = jax.nn.sigmoid(logit)
            # Whole 2x2 pooling (both rows + adjacent columns) as one tiny matmul.
            num = jnp.dot(xp * w, p4_t, preferred_element_type=jnp.float32)   # (C, Wp)
            if win_norm:
                # den = sum of 4 sigmoids in (0, 4) -> strictly positive.
                den = jnp.dot(w, p4_t, preferred_element_type=jnp.float32)
                y = num * pl.reciprocal(den, approx=True)
            else:
                y = num * 0.25
            o_ref[:, pl.ds(p * Wp, Wp)] = y.astype(o_ref.dtype)
            return carry

        if rh <= _ROW_UNROLL_MAX:
            for p in range(rh):                               # static unroll, LLO-visible
                row_pair(p, 0)
        else:
            jax.lax.fori_loop(0, rh, row_pair, 0)

    out3 = pl.pallas_call(
        kernel,
        out_shape=jax.ShapeDtypeStruct((B, C, Hp * Wp), out_dtype),
        grid=grid,
        in_specs=[
            pl.BlockSpec((pl.Squeezed(), C, l_in), lambda b, r: (b, 0, r)),
            pl.BlockSpec((C, C), lambda b, r: (0, 0)),        # grid-invariant conv weight
            pl.BlockSpec((C, 1), lambda b, r: (0, 0)),        # grid-invariant conv bias
            pl.BlockSpec((2 * W, Wp), lambda b, r: (0, 0)),   # grid-invariant pooling matrix
        ],
        out_specs=pl.BlockSpec((pl.Squeezed(), C, l_out), lambda b, r: (b, 0, r)),
        compiler_params=pltpu.CompilerParams(
            dimension_semantics=("parallel", "parallel"),
            vmem_limit_bytes=vmem_limit,
        ),
    )(x3, wct, b2, p4)

    # (B, C, Hp*Wp) -> NCHW: pure reshape, no transpose needed.
    return out3.reshape(B, C, Hp, Wp)


def pool2d_reference(x_nchw, conv_w, conv_b):
    """Pure-JAX f32 reference of the same forward (win_norm=True)."""
    B, C, H, W = x_nchw.shape
    xh = jnp.transpose(x_nchw, (0, 2, 3, 1))                  # (B, H, W, C)
    logit = jnp.einsum("bhwc,cd->bhwd", xh, conv_w) + conv_b
    w = jax.nn.sigmoid(logit)
    xw = xh * w

    def avgpool(t):  # 2x2 / stride 2 / no pad
        t = t.reshape(B, H // 2, 2, W // 2, 2, C)
        return t.mean(axis=(2, 4))

    y = avgpool(xw) / avgpool(w)                              # (B, Hp, Wp, C)
    return jnp.transpose(y, (0, 3, 1, 2))                     # NCHW


if __name__ == "__main__":
    key = jax.random.PRNGKey(0)
    kx, kw, kb = jax.random.split(key, 3)

    B, C, H, W = 2, 4, 16, 16
    x = jax.random.normal(kx, (B, C, H, W), jnp.float32)

    # Deterministic synthetic params for the pool_module's 1x1 conv (C -> C).
    conv_w = jax.random.normal(kw, (C, C), jnp.float32) * 0.1
    conv_b = jax.random.normal(kb, (C,), jnp.float32) * 0.1

    y = pool2d_pallas(x, conv_w, conv_b)
    jax.block_until_ready(y)

    y_ref = pool2d_reference(x, conv_w, conv_b)
    assert y.shape == (B, C, H // 2, W // 2)
    err = float(jnp.max(jnp.abs(y - y_ref)))
    # f32 data path; slack covers MXU pass precision + approx reciprocal.
    assert jnp.allclose(y, y_ref, rtol=2e-2, atol=2e-2), f"max abs err {err}"

    print("KERNEL_OK")
</pallas_src>

<mosaic_0001>
module attributes {stable_mosaic.version = 11 : i64} {
  func.func @kernel(%arg0: i32, %arg1: i32, %arg2: memref<1x4x256xf32, #tpu.memory_space<vmem>>, %arg3: memref<4x4xf32, #tpu.memory_space<vmem>>, %arg4: memref<4x1xf32, #tpu.memory_space<vmem>>, %arg5: memref<32x8xf32, #tpu.memory_space<vmem>>, %arg6: memref<1x4x64xf32, #tpu.memory_space<vmem>>) attributes {dimension_semantics = [#tpu.dimension_semantics<parallel>, #tpu.dimension_semantics<parallel>], iteration_bounds = array<i64: 2, 1>, scalar_prefetch = 0 : i64, scratch_operands = 0 : i64, tpu.core_type = #tpu.core_type<tc>, window_params = [{transform_indices = @transform_0, window_bounds = array<i64: 1, 4, 256>}, {pipeline_mode = #tpu.pipeline_mode<synchronous>, transform_indices = @transform_1, window_bounds = array<i64: 4, 4>}, {pipeline_mode = #tpu.pipeline_mode<synchronous>, transform_indices = @transform_2, window_bounds = array<i64: 4, 1>}, {pipeline_mode = #tpu.pipeline_mode<synchronous>, transform_indices = @transform_3, window_bounds = array<i64: 32, 8>}, {transform_indices = @transform_4, window_bounds = array<i64: 1, 4, 64>}]} {
    %c0 = arith.constant 0 : index
    %c0_0 = arith.constant 0 : index
    %0 = vector.load %arg3[%c0, %c0_0] : memref<4x4xf32, #tpu.memory_space<vmem>>, vector<4x4xf32>
    %c0_1 = arith.constant 0 : index
    %c0_2 = arith.constant 0 : index
    %1 = vector.load %arg5[%c0_1, %c0_2] : memref<32x8xf32, #tpu.memory_space<vmem>>, vector<32x8xf32>
    %c0_3 = arith.constant 0 : index
    %c0_4 = arith.constant 0 : index
    %2 = vector.load %arg4[%c0_3, %c0_4] : memref<4x1xf32, #tpu.memory_space<vmem>>, vector<4x1xf32>
    %3 = vector.shape_cast %2 : vector<4x1xf32> to vector<4x1xf32>
    %4 = vector.broadcast %3 : vector<4x1xf32> to vector<4x32xf32>
    %c0_5 = arith.constant 0 : index
    %c0_6 = arith.constant 0 : index
    %c0_7 = arith.constant 0 : index
    %5 = vector.load %arg2[%c0_5, %c0_6, %c0_7] : memref<1x4x256xf32, #tpu.memory_space<vmem>>, vector<1x4x32xf32>
    %6 = vector.shape_cast %5 : vector<1x4x32xf32> to vector<4x32xf32>
    %cst = arith.constant dense<0.000000e+00> : vector<4x32xf32>
    %7 = tpu.matmul %0, %6, %cst {dimension_numbers = #tpu.dot_dimension_numbers<[1], [0], [0], [1], [0, 0, 1, 1], [], []>} : vector<4x4xf32>, vector<4x32xf32>, vector<4x32xf32> -> vector<4x32xf32>
    %8 = arith.addf %7, %4 : vector<4x32xf32>
    %9 = arith.negf %8 : vector<4x32xf32>
    %10 = math.exp %9 : vector<4x32xf32>
    %cst_8 = arith.constant 1.000000e+00 : f32
    %11 = vector.broadcast %cst_8 : f32 to vector<4x32xf32>
    %12 = arith.addf %11, %10 : vector<4x32xf32>
    %13 = arith.divf %11, %12 : vector<4x32xf32>
    %14 = arith.mulf %6, %13 : vector<4x32xf32>
    %cst_9 = arith.constant dense<0.000000e+00> : vector<4x8xf32>
    %15 = tpu.matmul %14, %1, %cst_9 {dimension_numbers = #tpu.dot_dimension_numbers<[1], [0], [0], [1], [0, 0, 1, 1], [], []>} : vector<4x32xf32>, vector<32x8xf32>, vector<4x8xf32> -> vector<4x8xf32>
    %cst_10 = arith.constant dense<0.000000e+00> : vector<4x8xf32>
    %16 = tpu.matmul %13, %1, %cst_10 {dimension_numbers = #tpu.dot_dimension_numbers<[1], [0], [0], [1], [0, 0, 1, 1], [], []>} : vector<4x32xf32>, vector<32x8xf32>, vector<4x8xf32> -> vector<4x8xf32>
    %17 = tpu.reciprocal %16 {approx = true} : vector<4x8xf32> -> vector<4x8xf32>
    %18 = arith.mulf %15, %17 : vector<4x8xf32>
    %c0_11 = arith.constant 0 : index
    %c0_12 = arith.constant 0 : index
    %c0_13 = arith.constant 0 : index
    %19 = vector.load %arg6[%c0_11, %c0_12, %c0_13] : memref<1x4x64xf32, #tpu.memory_space<vmem>>, vector<1x4x8xf32>
    %20 = vector.shape_cast %19 : vector<1x4x8xf32> to vector<4x8xf32>
    %21 = vector.shape_cast %18 : vector<4x8xf32> to vector<1x4x8xf32>
    tpu.vector_store %arg6[%c0_11, %c0_12, %c0_13], %21 {strides = array<i32>} : memref<1x4x64xf32, #tpu.memory_space<vmem>>, vector<1x4x8xf32>,
    %c0_14 = arith.constant 0 : index
    %c0_15 = arith.constant 0 : index
    %c32 = arith.constant 32 : index
    %22 = vector.load %arg2[%c0_14, %c0_15, %c32] : memref<1x4x256xf32, #tpu.memory_space<vmem>>, vector<1x4x32xf32>
    %23 = vector.shape_cast %22 : vector<1x4x32xf32> to vector<4x32xf32>
    %cst_16 = arith.constant dense<0.000000e+00> : vector<4x32xf32>
    %24 = tpu.matmul %0, %23, %cst_16 {dimension_numbers = #tpu.dot_dimension_numbers<[1], [0], [0], [1], [0, 0, 1, 1], [], []>} : vector<4x4xf32>, vector<4x32xf32>, vector<4x32xf32> -> vector<4x32xf32>
    %25 = arith.addf %24, %4 : vector<4x32xf32>
    %26 = arith.negf %25 : vector<4x32xf32>
    %27 = math.exp %26 : vector<4x32xf32>
    %cst_17 = arith.constant 1.000000e+00 : f32
    %28 = vector.broadcast %cst_17 : f32 to vector<4x32xf32>
    %29 = arith.addf %28, %27 : vector<4x32xf32>
    %30 = arith.divf %28, %29 : vector<4x32xf32>
    %31 = arith.mulf %23, %30 : vector<4x32xf32>
    %cst_18 = arith.constant dense<0.000000e+00> : vector<4x8xf32>
    %32 = tpu.matmul %31, %1, %cst_18 {dimension_numbers = #tpu.dot_dimension_numbers<[1], [0], [0], [1], [0, 0, 1, 1], [], []>} : vector<4x32xf32>, vector<32x8xf32>, vector<4x8xf32> -> vector<4x8xf32>
    %cst_19 = arith.constant dense<0.000000e+00> : vector<4x8xf32>
    %33 = tpu.matmul %30, %1, %cst_19 {dimension_numbers = #tpu.dot_dimension_numbers<[1], [0], [0], [1], [0, 0, 1, 1], [], []>} : vector<4x32xf32>, vector<32x8xf32>, vector<4x8xf32> -> vector<4x8xf32>
    %34 = tpu.reciprocal %33 {approx = true} : vector<4x8xf32> -> vector<4x8xf32>
    %35 = arith.mulf %32, %34 : vector<4x8xf32>
    %c0_20 = arith.constant 0 : index
    %c0_21 = arith.constant 0 : index
    %c8 = arith.constant 8 : index
    %36 = vector.load %arg6[%c0_20, %c0_21, %c8] : memref<1x4x64xf32, #tpu.memory_space<vmem>>, vector<1x4x8xf32>
    %37 = vector.shape_cast %36 : vector<1x4x8xf32> to vector<4x8xf32>
    %38 = vector.shape_cast %35 : vector<4x8xf32> to vector<1x4x8xf32>
    tpu.vector_store %arg6[%c0_20, %c0_21, %c8], %38 {strides = array<i32>} : memref<1x4x64xf32, #tpu.memory_space<vmem>>, vector<1x4x8xf32>,
    %c0_22 = arith.constant 0 : index
    %c0_23 = arith.constant 0 : index
    %c64 = arith.constant 64 : index
    %39 = vector.load %arg2[%c0_22, %c0_23, %c64] : memref<1x4x256xf32, #tpu.memory_space<vmem>>, vector<1x4x32xf32>
    %40 = vector.shape_cast %39 : vector<1x4x32xf32> to vector<4x32xf32>
    %cst_24 = arith.constant dense<0.000000e+00> : vector<4x32xf32>
    %41 = tpu.matmul %0, %40, %cst_24 {dimension_numbers = #tpu.dot_dimension_numbers<[1], [0], [0], [1], [0, 0, 1, 1], [], []>} : vector<4x4xf32>, vector<4x32xf32>, vector<4x32xf32> -> vector<4x32xf32>
    %42 = arith.addf %41, %4 : vector<4x32xf32>
    %43 = arith.negf %42 : vector<4x32xf32>
    %44 = math.exp %43 : vector<4x32xf32>
    %cst_25 = arith.constant 1.000000e+00 : f32
    %45 = vector.broadcast %cst_25 : f32 to vector<4x32xf32>
    %46 = arith.addf %45, %44 : vector<4x32xf32>
    %47 = arith.divf %45, %46 : vector<4x32xf32>
    %48 = arith.mulf %40, %47 : vector<4x32xf32>
    %cst_26 = arith.constant dense<0.000000e+00> : vector<4x8xf32>
    %49 = tpu.matmul %48, %1, %cst_26 {dimension_numbers = #tpu.dot_dimension_numbers<[1], [0], [0], [1], [0, 0, 1, 1], [], []>} : vector<4x32xf32>, vector<32x8xf32>, vector<4x8xf32> -> vector<4x8xf32>
    %cst_27 = arith.constant dense<0.000000e+00> : vector<4x8xf32>
    %50 = tpu.matmul %47, %1, %cst_27 {dimension_numbers = #tpu.dot_dimension_numbers<[1], [0], [0], [1], [0, 0, 1, 1], [], []>} : vector<4x32xf32>, vector<32x8xf32>, vector<4x8xf32> -> vector<4x8xf32>
    %51 = tpu.reciprocal %50 {approx = true} : vector<4x8xf32> -> vector<4x8xf32>
    %52 = arith.mulf %49, %51 : vector<4x8xf32>
    %c0_28 = arith.constant 0 : index
    %c0_29 = arith.constant 0 : index
    %c16 = arith.constant 16 : index
    %53 = vector.load %arg6[%c0_28, %c0_29, %c16] : memref<1x4x64xf32, #tpu.memory_space<vmem>>, vector<1x4x8xf32>
    %54 = vector.shape_cast %53 : vector<1x4x8xf32> to vector<4x8xf32>
    %55 = vector.shape_cast %52 : vector<4x8xf32> to vector<1x4x8xf32>
    tpu.vector_store %arg6[%c0_28, %c0_29, %c16], %55 {strides = array<i32>} : memref<1x4x64xf32, #tpu.memory_space<vmem>>, vector<1x4x8xf32>,
    %c0_30 = arith.constant 0 : index
    %c0_31 = arith.constant 0 : index
    %c96 = arith.constant 96 : index
    %56 = vector.load %arg2[%c0_30, %c0_31, %c96] : memref<1x4x256xf32, #tpu.memory_space<vmem>>, vector<1x4x32xf32>
    %57 = vector.shape_cast %56 : vector<1x4x32xf32> to vector<4x32xf32>
    %cst_32 = arith.constant dense<0.000000e+00> : vector<4x32xf32>
    %58 = tpu.matmul %0, %57, %cst_32 {dimension_numbers = #tpu.dot_dimension_numbers<[1], [0], [0], [1], [0, 0, 1, 1], [], []>} : vector<4x4xf32>, vector<4x32xf32>, vector<4x32xf32> -> vector<4x32xf32>
    %59 = arith.addf %58, %4 : vector<4x32xf32>
    %60 = arith.negf %59 : vector<4x32xf32>
    %61 = math.exp %60 : vector<4x32xf32>
    %cst_33 = arith.constant 1.000000e+00 : f32
    %62 = vector.broadcast %cst_33 : f32 to vector<4x32xf32>
    %63 = arith.addf %62, %61 : vector<4x32xf32>
    %64 = arith.divf %62, %63 : vector<4x32xf32>
    %65 = arith.mulf %57, %64 : vector<4x32xf32>
    %cst_34 = arith.constant dense<0.000000e+00> : vector<4x8xf32>
    %66 = tpu.matmul %65, %1, %cst_34 {dimension_numbers = #tpu.dot_dimension_numbers<[1], [0], [0], [1], [0, 0, 1, 1], [], []>} : vector<4x32xf32>, vector<32x8xf32>, vector<4x8xf32> -> vector<4x8xf32>
    %cst_35 = arith.constant dense<0.000000e+00> : vector<4x8xf32>
    %67 = tpu.matmul %64, %1, %cst_35 {dimension_numbers = #tpu.dot_dimension_numbers<[1], [0], [0], [1], [0, 0, 1, 1], [], []>} : vector<4x32xf32>, vector<32x8xf32>, vector<4x8xf32> -> vector<4x8xf32>
    %68 = tpu.reciprocal %67 {approx = true} : vector<4x8xf32> -> vector<4x8xf32>
    %69 = arith.mulf %66, %68 : vector<4x8xf32>
    %c0_36 = arith.constant 0 : index
    %c0_37 = arith.constant 0 : index
    %c24 = arith.constant 24 : index
    %70 = vector.load %arg6[%c0_36, %c0_37, %c24] : memref<1x4x64xf32, #tpu.memory_space<vmem>>, vector<1x4x8xf32>
    %71 = vector.shape_cast %70 : vector<1x4x8xf32> to vector<4x8xf32>
    %72 = vector.shape_cast %69 : vector<4x8xf32> to vector<1x4x8xf32>
    tpu.vector_store %arg6[%c0_36, %c0_37, %c24], %72 {strides = array<i32>} : memref<1x4x64xf32, #tpu.memory_space<vmem>>, vector<1x4x8xf32>,
    %c0_38 = arith.constant 0 : index
    %c0_39 = arith.constant 0 : index
    %c128 = arith.constant 128 : index
    %73 = vector.load %arg2[%c0_38, %c0_39, %c128] : memref<1x4x256xf32, #tpu.memory_space<vmem>>, vector<1x4x32xf32>
    %74 = vector.shape_cast %73 : vector<1x4x32xf32> to vector<4x32xf32>
    %cst_40 = arith.constant dense<0.000000e+00> : vector<4x32xf32>
    %75 = tpu.matmul %0, %74, %cst_40 {dimension_numbers = #tpu.dot_dimension_numbers<[1], [0], [0], [1], [0, 0, 1, 1], [], []>} : vector<4x4xf32>, vector<4x32xf32>, vector<4x32xf32> -> vector<4x32xf32>
    %76 = arith.addf %75, %4 : vector<4x32xf32>
    %77 = arith.negf %76 : vector<4x32xf32>
    %78 = math.exp %77 : vector<4x32xf32>
    %cst_41 = arith.constant 1.000000e+00 : f32
    %79 = vector.broadcast %cst_41 : f32 to vector<4x32xf32>
    %80 = arith.addf %79, %78 : vector<4x32xf32>
    %81 = arith.divf %79, %80 : vector<4x32xf32>
    %82 = arith.mulf %74, %81 : vector<4x32xf32>
    %cst_42 = arith.constant dense<0.000000e+00> : vector<4x8xf32>
    %83 = tpu.matmul %82, %1, %cst_42 {dimension_numbers = #tpu.dot_dimension_numbers<[1], [0], [0], [1], [0, 0, 1, 1], [], []>} : vector<4x32xf32>, vector<32x8xf32>, vector<4x8xf32> -> vector<4x8xf32>
    %cst_43 = arith.constant dense<0.000000e+00> : vector<4x8xf32>
    %84 = tpu.matmul %81, %1, %cst_43 {dimension_numbers = #tpu.dot_dimension_numbers<[1], [0], [0], [1], [0, 0, 1, 1], [], []>} : vector<4x32xf32>, vector<32x8xf32>, vector<4x8xf32> -> vector<4x8xf32>
    %85 = tpu.reciprocal %84 {approx = true} : vector<4x8xf32> -> vector<4x8xf32>
    %86 = arith.mulf %83, %85 : vector<4x8xf32>
    %c0_44 = arith.constant 0 : index
    %c0_45 = arith.constant 0 : index
    %c32_46 = arith.constant 32 : index
    %87 = vector.load %arg6[%c0_44, %c0_45, %c32_46] : memref<1x4x64xf32, #tpu.memory_space<vmem>>, vector<1x4x8xf32>
    %88 = vector.shape_cast %87 : vector<1x4x8xf32> to vector<4x8xf32>
    %89 = vector.shape_cast %86 : vector<4x8xf32> to vector<1x4x8xf32>
    tpu.vector_store %arg6[%c0_44, %c0_45, %c32_46], %89 {strides = array<i32>} : memref<1x4x64xf32, #tpu.memory_space<vmem>>, vector<1x4x8xf32>,
    %c0_47 = arith.constant 0 : index
    %c0_48 = arith.constant 0 : index
    %c160 = arith.constant 160 : index
    %90 = vector.load %arg2[%c0_47, %c0_48, %c160] : memref<1x4x256xf32, #tpu.memory_space<vmem>>, vector<1x4x32xf32>
    %91 = vector.shape_cast %90 : vector<1x4x32xf32> to vector<4x32xf32>
    %cst_49 = arith.constant dense<0.000000e+00> : vector<4x32xf32>
    %92 = tpu.matmul %0, %91, %cst_49 {dimension_numbers = #tpu.dot_dimension_numbers<[1], [0], [0], [1], [0, 0, 1, 1], [], []>} : vector<4x4xf32>, vector<4x32xf32>, vector<4x32xf32> -> vector<4x32xf32>
    %93 = arith.addf %92, %4 : vector<4x32xf32>
    %94 = arith.negf %93 : vector<4x32xf32>
    %95 = math.exp %94 : vector<4x32xf32>
    %cst_50 = arith.constant 1.000000e+00 : f32
    %96 = vector.broadcast %cst_50 : f32 to vector<4x32xf32>
    %97 = arith.addf %96, %95 : vector<4x32xf32>
    %98 = arith.divf %96, %97 : vector<4x32xf32>
    %99 = arith.mulf %91, %98 : vector<4x32xf32>
    %cst_51 = arith.constant dense<0.000000e+00> : vector<4x8xf32>
    %100 = tpu.matmul %99, %1, %cst_51 {dimension_numbers = #tpu.dot_dimension_numbers<[1], [0], [0], [1], [0, 0, 1, 1], [], []>} : vector<4x32xf32>, vector<32x8xf32>, vector<4x8xf32> -> vector<4x8xf32>
    %cst_52 = arith.constant dense<0.000000e+00> : vector<4x8xf32>
    %101 = tpu.matmul %98, %1, %cst_52 {dimension_numbers = #tpu.dot_dimension_numbers<[1], [0], [0], [1], [0, 0, 1, 1], [], []>} : vector<4x32xf32>, vector<32x8xf32>, vector<4x8xf32> -> vector<4x8xf32>
    %102 = tpu.reciprocal %101 {approx = true} : vector<4x8xf32> -> vector<4x8xf32>
    %103 = arith.mulf %100, %102 : vector<4x8xf32>
    %c0_53 = arith.constant 0 : index
    %c0_54 = arith.constant 0 : index
    %c40 = arith.constant 40 : index
    %104 = vector.load %arg6[%c0_53, %c0_54, %c40] : memref<1x4x64xf32, #tpu.memory_space<vmem>>, vector<1x4x8xf32>
    %105 = vector.shape_cast %104 : vector<1x4x8xf32> to vector<4x8xf32>
    %106 = vector.shape_cast %103 : vector<4x8xf32> to vector<1x4x8xf32>
    tpu.vector_store %arg6[%c0_53, %c0_54, %c40], %106 {strides = array<i32>} : memref<1x4x64xf32, #tpu.memory_space<vmem>>, vector<1x4x8xf32>,
    %c0_55 = arith.constant 0 : index
    %c0_56 = arith.constant 0 : index
    %c192 = arith.constant 192 : index
    %107 = vector.load %arg2[%c0_55, %c0_56, %c192] : memref<1x4x256xf32, #tpu.memory_space<vmem>>, vector<1x4x32xf32>
    %108 = vector.shape_cast %107 : vector<1x4x32xf32> to vector<4x32xf32>
    %cst_57 = arith.constant dense<0.000000e+00> : vector<4x32xf32>
    %109 = tpu.matmul %0, %108, %cst_57 {dimension_numbers = #tpu.dot_dimension_numbers<[1], [0], [0], [1], [0, 0, 1, 1], [], []>} : vector<4x4xf32>, vector<4x32xf32>, vector<4x32xf32> -> vector<4x32xf32>
    %110 = arith.addf %109, %4 : vector<4x32xf32>
    %111 = arith.negf %110 : vector<4x32xf32>
    %112 = math.exp %111 : vector<4x32xf32>
    %cst_58 = arith.constant 1.000000e+00 : f32
    %113 = vector.broadcast %cst_58 : f32 to vector<4x32xf32>
    %114 = arith.addf %113, %112 : vector<4x32xf32>
    %115 = arith.divf %113, %114 : vector<4x32xf32>
    %116 = arith.mulf %108, %115 : vector<4x32xf32>
    %cst_59 = arith.constant dense<0.000000e+00> : vector<4x8xf32>
    %117 = tpu.matmul %116, %1, %cst_59 {dimension_numbers = #tpu.dot_dimension_numbers<[1], [0], [0], [1], [0, 0, 1, 1], [], []>} : vector<4x32xf32>, vector<32x8xf32>, vector<4x8xf32> -> vector<4x8xf32>
    %cst_60 = arith.constant dense<0.000000e+00> : vector<4x8xf32>
    %118 = tpu.matmul %115, %1, %cst_60 {dimension_numbers = #tpu.dot_dimension_numbers<[1], [0], [0], [1], [0, 0, 1, 1], [], []>} : vector<4x32xf32>, vector<32x8xf32>, vector<4x8xf32> -> vector<4x8xf32>
    %119 = tpu.reciprocal %118 {approx = true} : vector<4x8xf32> -> vector<4x8xf32>
    %120 = arith.mulf %117, %119 : vector<4x8xf32>
    %c0_61 = arith.constant 0 : index
    %c0_62 = arith.constant 0 : index
    %c48 = arith.constant 48 : index
    %121 = vector.load %arg6[%c0_61, %c0_62, %c48] : memref<1x4x64xf32, #tpu.memory_space<vmem>>, vector<1x4x8xf32>
    %122 = vector.shape_cast %121 : vector<1x4x8xf32> to vector<4x8xf32>
    %123 = vector.shape_cast %120 : vector<4x8xf32> to vector<1x4x8xf32>
    tpu.vector_store %arg6[%c0_61, %c0_62, %c48], %123 {strides = array<i32>} : memref<1x4x64xf32, #tpu.memory_space<vmem>>, vector<1x4x8xf32>,
    %c0_63 = arith.constant 0 : index
    %c0_64 = arith.constant 0 : index
    %c224 = arith.constant 224 : index
    %124 = vector.load %arg2[%c0_63, %c0_64, %c224] : memref<1x4x256xf32, #tpu.memory_space<vmem>>, vector<1x4x32xf32>
    %125 = vector.shape_cast %124 : vector<1x4x32xf32> to vector<4x32xf32>
    %cst_65 = arith.constant dense<0.000000e+00> : vector<4x32xf32>
    %126 = tpu.matmul %0, %125, %cst_65 {dimension_numbers = #tpu.dot_dimension_numbers<[1], [0], [0], [1], [0, 0, 1, 1], [], []>} : vector<4x4xf32>, vector<4x32xf32>, vector<4x32xf32> -> vector<4x32xf32>
    %127 = arith.addf %126, %4 : vector<4x32xf32>
    %128 = arith.negf %127 : vector<4x32xf32>
    %129 = math.exp %128 : vector<4x32xf32>
    %cst_66 = arith.constant 1.000000e+00 : f32
    %130 = vector.broadcast %cst_66 : f32 to vector<4x32xf32>
    %131 = arith.addf %130, %129 : vector<4x32xf32>
    %132 = arith.divf %130, %131 : vector<4x32xf32>
    %133 = arith.mulf %125, %132 : vector<4x32xf32>
    %cst_67 = arith.constant dense<0.000000e+00> : vector<4x8xf32>
    %134 = tpu.matmul %133, %1, %cst_67 {dimension_numbers = #tpu.dot_dimension_numbers<[1], [0], [0], [1], [0, 0, 1, 1], [], []>} : vector<4x32xf32>, vector<32x8xf32>, vector<4x8xf32> -> vector<4x8xf32>
    %cst_68 = arith.constant dense<0.000000e+00> : vector<4x8xf32>
    %135 = tpu.matmul %132, %1, %cst_68 {dimension_numbers = #tpu.dot_dimension_numbers<[1], [0], [0], [1], [0, 0, 1, 1], [], []>} : vector<4x32xf32>, vector<32x8xf32>, vector<4x8xf32> -> vector<4x8xf32>
    %136 = tpu.reciprocal %135 {approx = true} : vector<4x8xf32> -> vector<4x8xf32>
    %137 = arith.mulf %134, %136 : vector<4x8xf32>
    %c0_69 = arith.constant 0 : index
    %c0_70 = arith.constant 0 : index
    %c56 = arith.constant 56 : index
    %138 = vector.load %arg6[%c0_69, %c0_70, %c56] : memref<1x4x64xf32, #tpu.memory_space<vmem>>, vector<1x4x8xf32>
    %139 = vector.shape_cast %138 : vector<1x4x8xf32> to vector<4x8xf32>
    %140 = vector.shape_cast %137 : vector<4x8xf32> to vector<1x4x8xf32>
    tpu.vector_store %arg6[%c0_69, %c0_70, %c56], %140 {strides = array<i32>} : memref<1x4x64xf32, #tpu.memory_space<vmem>>, vector<1x4x8xf32>,
    return
  }
  func.func @transform_0(%arg0: i32, %arg1: i32) -> (i32, i32, i32) {
    %c0_i32 = arith.constant 0 : i32
    %c0_i32_0 = arith.constant 0 : i32
    return %arg0, %c0_i32, %arg1 : i32, i32, i32
  }
  func.func @transform_1(%arg0: i32, %arg1: i32) -> (i32, i32) {
    %c0_i32 = arith.constant 0 : i32
    %c0_i32_0 = arith.constant 0 : i32
    %c0_i32_1 = arith.constant 0 : i32
    return %c0_i32, %c0_i32_0 : i32, i32
  }
  func.func @transform_2(%arg0: i32, %arg1: i32) -> (i32, i32) {
    %c0_i32 = arith.constant 0 : i32
    %c0_i32_0 = arith.constant 0 : i32
    %c0_i32_1 = arith.constant 0 : i32
    return %c0_i32, %c0_i32_0 : i32, i32
  }
  func.func @transform_3(%arg0: i32, %arg1: i32) -> (i32, i32) {
    %c0_i32 = arith.constant 0 : i32
    %c0_i32_0 = arith.constant 0 : i32
    %c0_i32_1 = arith.constant 0 : i32
    return %c0_i32, %c0_i32_0 : i32, i32
  }
  func.func @transform_4(%arg0: i32, %arg1: i32) -> (i32, i32, i32) {
    %c0_i32 = arith.constant 0 : i32
    %c0_i32_0 = arith.constant 0 : i32
    return %arg0, %c0_i32, %arg1 : i32, i32, i32
  }
}

</mosaic_0001>

<llo_original>
// kernel: tpu_custom_call.1
$region0: #{tpu_custom_call.1}
  #allocation0 [shape = 'u32[]', space=smem, size = 0x4, offset = 0x4, fixed_abs, tag = 'smem constant byte address 0x4 - core index']
  #allocation1 [shape = 'u32[144,128]{1,0:T(1,128)}', space=vmem, size = 0x12000, scoped, tag = 'internal scratch']
  %s0 = inlined_call_operand.vmem [shape: f32[2,4,256], index: 0, kind: input, shape index: {}]
  %s1 = inlined_call_operand.vmem [shape: f32[4,4], index: 1, kind: input, shape index: {}]
  %s2 = inlined_call_operand.vmem [shape: f32[4,1], index: 2, kind: input, shape index: {}]
  %s3 = inlined_call_operand.vmem [shape: f32[32,8], index: 3, kind: input, shape index: {}]
  %s4 = inlined_call_operand.hbm [shape: f32[2,4,64], index: 4, kind: output, shape index: {}]
  %s5 = sld [smem:[#allocation0]]
  $region49: #{tpu_custom_call.1} parent=0
    _
  %s7 = ssub.s32 1, %s5
  %s8 = scalar_select 0, %s7, %s5
  $region1: #{tpu_custom_call.1} parent=0
    #allocation2 [shape = 'u8[4096]{0}', space=vmem, size = 0x1000, scoped, tag = 'output window, operand 0']
    #allocation3 [shape = 's32[2]{0}', space=sflag, size = 0x8, scoped, tag = 'scoped memory for tpu_custom_call.1']
    %9 = vsyncpa [#allocation3], 0
    %s10 = scalar_lea.sflag [#allocation3], 1
    %11 = vsyncpa %s10, 0
    loop: start=0, step=1, limit=4
    $region2: #{tpu_custom_call.1} parent=1 // loop_pre_header
      _
    $region3: #{tpu_custom_call.1} parent=1 // loop_header
      %s13 = sphi 0, %s17
      %p14 = scmp.ge.s32.totalorder %s13, 4
      %s20 = sphi 0, %s32
      %s21 = sphi 0, %s28
      %s22 = sphi 0, %s20
      %s23 = sphi 0, %s21
      %s24 = sphi 0, %s22
      %s25 = sphi 0, %s23
      %s37 = sphi 0, %s39
      %s40 = sphi 0, %s37
      %s41 = sphi 0, %s40
      %s57 = sphi 0, %s41
      %s61 = sphi 0, %s61
      %s63 = sphi 0, %s61
      %s64 = sphi 0, %s63
      %s78 = sphi 0, %s64
      %s82 = sphi 0, %s82
      %s84 = sphi 0, %s82
      %s85 = sphi 0, %s84
      %s99 = sphi 0, %s85
      %s103 = sphi 0, %s103
      %s105 = sphi 0, %s103
      %s106 = sphi 0, %s105
      %s120 = sphi 0, %s106
      %s128 = sphi 0, %s130
      %s131 = sphi 0, %s128
      %s132 = sphi 0, %s131
      %s148 = sphi 0, %s132
    $region4: #{tpu_custom_call.1} parent=1 // loop_header_branch
      %16 = sbr.rel (%p14) target = $region8
    $region5: #{tpu_custom_call.1} parent=1 // loop_body
      %s18 = ssub.s32 %s13, 1
      %s19 = ssub.s32 %s13, 2
      %s26 = sadd.s32 1, %s21
      %p27 = scmp.ge.s32.totalorder %s26, 1
      %s28 = scalar_select %p27, 0, %s26
      %s29 = sadd.s32 1, %s20
      %s30 = scalar_select %p27, %s29, %s20
      %p31 = scmp.ge.s32.totalorder %s30, 2
      %s32 = scalar_select %p31, 0, %s30
      %s33 = ssub.s32 %s20, %s32
      %s34 = ssub.s32 %s21, %s28
      %s35 = sor.u32 %s33, %s34
      %p36 = scmp.eq.s32.totalorder %s35, 0
      %s38 = sadd.s32 %s37, 1
      %s39 = scalar_select %p36, %s37, %s38
      %p42 = pneg %p36
      %p43 = scmp.eq.s32.totalorder %s13, 1
      %p44 = por %p42, %p43
      %p45 = scmp.ne.s32.totalorder %s37, %s40
      %p46 = scmp.eq.s32.totalorder %s13, 0
      %p47 = por %p45, %p46
      %p48 = scmp.ne.s32.totalorder %s37, %s40
      %p49 = scmp.eq.s32.totalorder %s18, 1
      %p50 = por %p48, %p49
      %p51 = scmp.ne.s32.totalorder %s40, %s41
      %p52 = scmp.eq.s32.totalorder %s18, 0
      %p53 = por %p51, %p52
      %p54 = scmp.ne.s32.totalorder %s40, %s41
      %p55 = scmp.eq.s32.totalorder %s19, 1
      %p56 = por %p54, %p55
      %p58 = scmp.ne.s32.totalorder %s41, %s57
      %p59 = scmp.eq.s32.totalorder %s19, 0
      %p60 = por %p58, %p59
      %s62 = sadd.s32 %s61, 1
      %p65 = scmp.eq.s32.totalorder %s13, 1
      %p66 = scmp.ne.s32.totalorder %s61, %s63
      %p67 = scmp.eq.s32.totalorder %s13, 0
      %p68 = por %p66, %p67
      %p69 = scmp.ne.s32.totalorder %s61, %s63
      %p70 = scmp.eq.s32.totalorder %s18, 1
      %p71 = por %p69, %p70
      %p72 = scmp.ne.s32.totalorder %s63, %s64
      %p73 = scmp.eq.s32.totalorder %s18, 0
      %p74 = por %p72, %p73
      %p75 = scmp.ne.s32.totalorder %s63, %s64
      %p76 = scmp.eq.s32.totalorder %s19, 1
      %p77 = por %p75, %p76
      %p79 = scmp.ne.s32.totalorder %s64, %s78
      %p80 = scmp.eq.s32.totalorder %s19, 0
      %p81 = por %p79, %p80
      %s83 = sadd.s32 %s82, 1
      %p86 = scmp.eq.s32.totalorder %s13, 1
      %p87 = scmp.ne.s32.totalorder %s82, %s84
      %p88 = scmp.eq.s32.totalorder %s13, 0
      %p89 = por %p87, %p88
      %p90 = scmp.ne.s32.totalorder %s82, %s84
      %p91 = scmp.eq.s32.totalorder %s18, 1
      %p92 = por %p90, %p91
      %p93 = scmp.ne.s32.totalorder %s84, %s85
      %p94 = scmp.eq.s32.totalorder %s18, 0
      %p95 = por %p93, %p94
      %p96 = scmp.ne.s32.totalorder %s84, %s85
      %p97 = scmp.eq.s32.totalorder %s19, 1
      %p98 = por %p96, %p97
      %p100 = scmp.ne.s32.totalorder %s85, %s99
      %p101 = scmp.eq.s32.totalorder %s19, 0
      %p102 = por %p100, %p101
      %s104 = sadd.s32 %s103, 1
      %p107 = scmp.eq.s32.totalorder %s13, 1
      %p108 = scmp.ne.s32.totalorder %s103, %s105
      %p109 = scmp.eq.s32.totalorder %s13, 0
      %p110 = por %p108, %p109
      %p111 = scmp.ne.s32.totalorder %s103, %s105
      %p112 = scmp.eq.s32.totalorder %s18, 1
      %p113 = por %p111, %p112
      %p114 = scmp.ne.s32.totalorder %s105, %s106
      %p115 = scmp.eq.s32.totalorder %s18, 0
      %p116 = por %p114, %p115
      %p117 = scmp.ne.s32.totalorder %s105, %s106
      %p118 = scmp.eq.s32.totalorder %s19, 1
      %p119 = por %p117, %p118
      %p121 = scmp.ne.s32.totalorder %s106, %s120
      %p122 = scmp.eq.s32.totalorder %s19, 0
      %p123 = por %p121, %p122
      %s124 = ssub.s32 %s20, %s32
      %s125 = ssub.s32 %s21, %s28
      %s126 = sor.u32 %s124, %s125
      %p127 = scmp.eq.s32.totalorder %s126, 0
      %s129 = sadd.s32 %s128, 1
      %s130 = scalar_select %p127, %s128, %s129
      %p133 = pneg %p127
      %p134 = scmp.eq.s32.totalorder %s13, 1
      %p135 = por %p133, %p134
      %p136 = scmp.ne.s32.totalorder %s128, %s131
      %p137 = scmp.eq.s32.totalorder %s13, 0
      %p138 = por %p136, %p137
      %p139 = scmp.ne.s32.totalorder %s128, %s131
      %p140 = scmp.eq.s32.totalorder %s18, 1
      %p141 = por %p139, %p140
      %p142 = scmp.ne.s32.totalorder %s131, %s132
      %p143 = scmp.eq.s32.totalorder %s18, 0
      %p144 = por %p142, %p143
      %p145 = scmp.ne.s32.totalorder %s131, %s132
      %p146 = scmp.eq.s32.totalorder %s19, 1
      %p147 = por %p145, %p146
      %p149 = scmp.ne.s32.totalorder %s132, %s148
      %p150 = scmp.eq.s32.totalorder %s19, 0
      %p151 = por %p149, %p150
      %p152 = scmp.le.s32.totalorder 1, %s13
      %p153 = scmp.lt.s32.totalorder %s13, 3
      %p154 = pnand %p152, %p153
      %p155 = pneg %p154
      // Predicated region
      $region9: #{tpu_custom_call.1} parent=5 // pred_check
        _
      $region10: #{tpu_custom_call.1} parent=5 // pred_check_branch
        %157 = sbr.rel (%p154) target = $region12
      $region11: #{tpu_custom_call.1} parent=5 // pred_region
        %s158 = ssub.s32 %s13, 1
        // Predicated region
        $region13: #{tpu_custom_call.1} parent=11 // pred_check
          %p159 = pneg %p74
        $region14: #{tpu_custom_call.1} parent=11 // pred_check_branch
          %161 = sbr.rel (%p159) target = $region16
        $region15: #{tpu_custom_call.1} parent=11 // pred_region
          _
        $region16: #{tpu_custom_call.1} parent=11 // pred_fallthru
          _
        // Predicated region
        $region17: #{tpu_custom_call.1} parent=11 // pred_check
          %p162 = pneg %p95
        $region18: #{tpu_custom_call.1} parent=11 // pred_check_branch
          %164 = sbr.rel (%p162) target = $region20
        $region19: #{tpu_custom_call.1} parent=11 // pred_region
          _
        $region20: #{tpu_custom_call.1} parent=11 // pred_fallthru
          _
        // Predicated region
        $region21: #{tpu_custom_call.1} parent=11 // pred_check
          %p165 = pneg %p116
        $region22: #{tpu_custom_call.1} parent=11 // pred_check_branch
          %167 = sbr.rel (%p165) target = $region24
        $region23: #{tpu_custom_call.1} parent=11 // pred_region
          _
        $region24: #{tpu_custom_call.1} parent=11 // pred_fallthru
          _
      $region12: #{tpu_custom_call.1} parent=5 // pred_fallthru
        _
      %p168 = scmp.lt.s32.totalorder %s13, 2
      // Predicated region
      $region25: #{tpu_custom_call.1} parent=5 // pred_check
        %p169 = pneg %p168
      $region26: #{tpu_custom_call.1} parent=5 // pred_check_branch
        %171 = sbr.rel (%p169) target = $region28
      $region27: #{tpu_custom_call.1} parent=5 // pred_region
        // Predicated region
        $region29: #{tpu_custom_call.1} parent=27 // pred_check
          %p172 = pneg %p47
        $region30: #{tpu_custom_call.1} parent=27 // pred_check_branch
          %174 = sbr.rel (%p172) target = $region32
        $region31: #{tpu_custom_call.1} parent=27 // pred_region
          %s175 = smul.u32 2, %s21
          %p176 = scmp.lt.s32.totalorder %s20, 1
          %s177 = scalar_select %p176, %s20, 1
          %p178 = scmp.lt.s32.totalorder %s175, 1
          %s179 = scalar_select %p178, %s175, 1
          %s180 = smul.addr %s177, 2
          %s181 = sadd.s32 %s179, %s180
          %s182 = smul.addr %s181, 4
          %s183 = scalar_lea.vmem %s0, %s182
          %s184 = smul.u32 2, %s21
        $region32: #{tpu_custom_call.1} parent=27 // pred_fallthru
          _
      $region28: #{tpu_custom_call.1} parent=5 // pred_fallthru
        _
      %p185 = scmp.le.s32.totalorder 1, %s13
      %p186 = scmp.lt.s32.totalorder %s13, 3
      %p187 = pnand %p185, %p186
      %p188 = pneg %p187
      // Predicated region
      $region33: #{tpu_custom_call.1} parent=5 // pred_check
        _
      $region34: #{tpu_custom_call.1} parent=5 // pred_check_branch
        %190 = sbr.rel (%p187) target = $region36
      $region35: #{tpu_custom_call.1} parent=5 // pred_region
        %s191 = ssub.s32 %s13, 1
        %s192 = smul.u32 2, %s23
        %p193 = scmp.lt.s32.totalorder %s22, 1
        %s194 = scalar_select %p193, %s22, 1
        %p195 = scmp.lt.s32.totalorder %s192, 1
        %s196 = scalar_select %p195, %s192, 1
        %s197 = smul.addr %s194, 2
        %s198 = sadd.s32 %s196, %s197
        %s199 = smul.addr %s198, 4
        %s200 = scalar_lea.vmem %s0, %s199
        %p201 = pneg %p53
        %p202 = pneg %p50
        %p203 = pneg %p74
        %p204 = pneg %p71
        %p205 = pneg %p95
        %p206 = pneg %p92
        %p207 = pneg %p116
        %p208 = pneg %p113
        %p209 = pneg %p144
        %p210 = pneg %p141
        %s211 = sand.u32 %s131, 1
        %s212 = scalar_lea.sflag [#allocation3], %s211
        %s213 = sand.u32 %s131, 1
        %s214 = smul.addr %s213, 4
        %s215 = scalar_lea.vmem [#allocation2], %s214
        %s216 = smul.u32 2, %s23
        %p217 = scmp.lt.s32.totalorder %s22, 1
        %s218 = scalar_select %p217, %s22, 1
        %p219 = scmp.lt.s32.totalorder %s216, 1
        %s220 = scalar_select %p219, %s216, 1
        %s221 = smul.addr %s218, 2
        %s222 = sadd.s32 %s220, %s221
        %s223 = smul.addr %s222, 4
        %s224 = scalar_lea.vmem %s0, %s223
        %s225 = smul.u32 2, %s23
        %v226 = vld [vmem:[%s1] sm:$0xf]
        %v227 = vld [vmem:[%s3] sm:$0xff]
        %v228 = vld [vmem:[%s3 + $0x8] sm:$0xff]
        %v229 = vld [vmem:[%s3 + $0x10] sm:$0xff]
        %v230 = vld [vmem:[%s3 + $0x18] sm:$0xff]
        %v231 = vld [vmem:[%s2] sm:$0xf]
        %233 = vset.pattern.permute.xlu0 0
        %234 = vperm.xlu0 %233, %v231
        %v235 = vpop.permute.xlu0 %234
        %v237 = vld [vmem:[%s224] sm:$0xf]
        %vm238 = vcmask 31744
        %v240 = vsel %vm238, %v226, 0
        %vm242 = vcmask 1043456
        %v244 = vsel %vm242, %v237, 0
        %246 = vmatprep.subr.mxu0 0.0
        %247 = vmatpush1.msra.mxu0 0.0
        %248 = vmatprep.subr.mxu0 0.0
        %249 = vmatpush1.msra.mxu0 0.0
        %250 = vmatprep.subr.mxu0 0.0
        %251 = vmatpush1.msra.mxu0 0.0
        %252 = vmatprep.subr.mxu0 0.0
        %253 = vmatpush1.msra.mxu0 0.0
        %254 = vmatprep.subr.mxu0 0.0
        %255 = vmatpush1.msra.mxu0 0.0
        %256 = vmatprep.subr.mxu0 0.0
        %257 = vmatpush1.msra.mxu0 0.0
        %258 = vmatprep.subr.mxu0 0.0
        %259 = vmatpush1.msra.mxu0 0.0
        %260 = vmatprep.subr.mxu0 0.0
        %261 = vmatpush1.msra.mxu0 0.0
        %262 = vmatprep.subr.mxu0 0.0
        %263 = vmatpush1.msra.mxu0 0.0
        %264 = vmatprep.subr.mxu0 0.0
        %265 = vmatpush1.msra.mxu0 0.0
        %266 = vmatprep.subr.mxu0 0.0
        %267 = vmatpush1.msra.mxu0 0.0
        %268 = vmatprep.subr.mxu0 0.0
        %269 = vmatpush1.msra.mxu0 0.0
        %270 = vmatprep.subr.mxu0 0.0
        %271 = vmatpush1.msra.mxu0 0.0
        %272 = vmatprep.subr.mxu0 0.0
        %273 = vmatpush1.msra.mxu0 0.0
        %274 = vmatprep.subr.mxu0 0.0
        %275 = vmatpush1.msra.mxu0 0.0
        %276 = vmatprep.subr.mxu0 0.0
        %277 = vmatpush1.msra.mxu0 %v244
        %278 = vmatprep.subr.mxu0 0.0
        %279 = vmatpush2.msra.mxu0 0.0
        %280 = vmatprep.subr.mxu0 0.0
        %281 = vmatpush2.msra.mxu0 0.0
        %282 = vmatprep.subr.mxu0 0.0
        %283 = vmatpush2.msra.mxu0 0.0
        %284 = vmatprep.subr.mxu0 0.0
        %285 = vmatpush2.msra.mxu0 0.0
        %286 = vmatprep.subr.mxu0 0.0
        %287 = vmatpush2.msra.mxu0 0.0
        %288 = vmatprep.subr.mxu0 0.0
        %289 = vmatpush2.msra.mxu0 0.0
        %290 = vmatprep.subr.mxu0 0.0
        %291 = vmatpush2.msra.mxu0 0.0
        %292 = vmatprep.subr.mxu0 0.0
        %293 = vmatpush2.msra.mxu0 0.0
        %294 = vmatprep.subr.mxu0 0.0
        %295 = vmatpush2.msra.mxu0 0.0
        %296 = vmatprep.subr.mxu0 0.0
        %297 = vmatpush2.msra.mxu0 0.0
        %298 = vmatprep.subr.mxu0 0.0
        %299 = vmatpush2.msra.mxu0 0.0
        %300 = vmatprep.subr.mxu0 0.0
        %301 = vmatpush2.msra.mxu0 0.0
        %302 = vmatprep.subr.mxu0 0.0
        %303 = vmatpush2.msra.mxu0 0.0
        %304 = vmatprep.subr.mxu0 0.0
        %305 = vmatpush2.msra.mxu0 0.0
        %306 = vmatprep.subr.mxu0 0.0
        %307 = vmatpush2.msra.mxu0 0.0
        %308 = vmatprep.subr.mxu0 0.0
        %309 = vmatpush2.msra.mxu0 0.0
        %310 = vmatprep.mubr.f32.mxu0 0.0
        %311 = vmatmul.mubr.f32.gmra.mxu0 %v240
        %v312 = vpop.f32.mrf.mxu0
        %v313 = vadd.f32 %v235, %v312
        %v314 = vpop.f32.mrf.mxu0
        %315 = vdwg.mxu0
        %v316 = vxor.u32 %v313, 2147483648
        %v317 = vmul.f32 %v316, 1.442695
        %v318 = vpow.pop %v317
        %v319 = vadd.f32 %v318, 1.0
        %v320 = vrcp.pop %v319
        %v321 = vmul.f32 1.0, %v320
        %v322 = vmul.f32 %v237, %v321
        %vm323 = vcmask 261120
        %v325 = vsel %vm323, %v322, 0
        %327 = vmatprep.subr.mxu0 0.0
        %328 = vmatpush1.msra.mxu0 0.0
        %329 = vmatprep.subr.mxu0 0.0
        %330 = vmatpush1.msra.mxu0 0.0
        %331 = vmatprep.subr.mxu0 0.0
        %332 = vmatpush1.msra.mxu0 0.0
        %333 = vmatprep.subr.mxu0 0.0
        %334 = vmatpush1.msra.mxu0 0.0
        %335 = vmatprep.subr.mxu0 0.0
        %336 = vmatpush1.msra.mxu0 0.0
        %337 = vmatprep.subr.mxu0 0.0
        %338 = vmatpush1.msra.mxu0 0.0
        %339 = vmatprep.subr.mxu0 0.0
        %340 = vmatpush1.msra.mxu0 0.0
        %341 = vmatprep.subr.mxu0 0.0
        %342 = vmatpush1.msra.mxu0 0.0
        %343 = vmatprep.subr.mxu0 0.0
        %344 = vmatpush1.msra.mxu0 0.0
        %345 = vmatprep.subr.mxu0 0.0
        %346 = vmatpush1.msra.mxu0 0.0
        %347 = vmatprep.subr.mxu0 0.0
        %348 = vmatpush1.msra.mxu0 0.0
        %349 = vmatprep.subr.mxu0 0.0
        %350 = vmatpush1.msra.mxu0 0.0
        %351 = vmatprep.subr.mxu0 0.0
        %352 = vmatpush1.msra.mxu0 %v230
        %353 = vmatprep.subr.mxu0 0.0
        %354 = vmatpush1.msra.mxu0 %v229
        %355 = vmatprep.subr.mxu0 0.0
        %356 = vmatpush1.msra.mxu0 %v228
        %357 = vmatprep.subr.mxu0 0.0
        %358 = vmatpush1.msra.mxu0 %v227
        %359 = vmatprep.subr.mxu0 0.0
        %360 = vmatpush2.msra.mxu0 0.0
        %361 = vmatprep.subr.mxu0 0.0
        %362 = vmatpush2.msra.mxu0 0.0
        %363 = vmatprep.subr.mxu0 0.0
        %364 = vmatpush2.msra.mxu0 0.0
        %365 = vmatprep.subr.mxu0 0.0
        %366 = vmatpush2.msra.mxu0 0.0
        %367 = vmatprep.subr.mxu0 0.0
        %368 = vmatpush2.msra.mxu0 0.0
        %369 = vmatprep.subr.mxu0 0.0
        %370 = vmatpush2.msra.mxu0 0.0
        %371 = vmatprep.subr.mxu0 0.0
        %372 = vmatpush2.msra.mxu0 0.0
        %373 = vmatprep.subr.mxu0 0.0
        %374 = vmatpush2.msra.mxu0 0.0
        %375 = vmatprep.subr.mxu0 0.0
        %376 = vmatpush2.msra.mxu0 0.0
        %377 = vmatprep.subr.mxu0 0.0
        %378 = vmatpush2.msra.mxu0 0.0
        %379 = vmatprep.subr.mxu0 0.0
        %380 = vmatpush2.msra.mxu0 0.0
        %381 = vmatprep.subr.mxu0 0.0
        %382 = vmatpush2.msra.mxu0 0.0
        %383 = vmatprep.subr.mxu0 0.0
        %384 = vmatpush2.msra.mxu0 0.0
        %385 = vmatprep.subr.mxu0 0.0
        %386 = vmatpush2.msra.mxu0 0.0
        %387 = vmatprep.subr.mxu0 0.0
        %388 = vmatpush2.msra.mxu0 0.0
        %389 = vmatprep.subr.mxu0 0.0
        %390 = vmatpush2.msra.mxu0 0.0
        %391 = vmatprep.mubr.f32.mxu0 0.0
        %392 = vmatmul.mubr.f32.gmra.mxu0 %v325
        %v393 = vpop.f32.mrf.mxu0
        %v394 = vadd.f32 0.0, %v393
        %v395 = vpop.f32.mrf.mxu0
        %396 = vdwg.mxu0
        %v398 = vsel %vm323, %v321, 0
        %400 = vmatprep.subr.mxu0 0.0
        %401 = vmatpush1.msra.mxu0 0.0
        %402 = vmatprep.subr.mxu0 0.0
        %403 = vmatpush1.msra.mxu0 0.0
        %404 = vmatprep.subr.mxu0 0.0
        %405 = vmatpush1.msra.mxu0 0.0
        %406 = vmatprep.subr.mxu0 0.0
        %407 = vmatpush1.msra.mxu0 0.0
        %408 = vmatprep.subr.mxu0 0.0
        %409 = vmatpush1.msra.mxu0 0.0
        %410 = vmatprep.subr.mxu0 0.0
        %411 = vmatpush1.msra.mxu0 0.0
        %412 = vmatprep.subr.mxu0 0.0
        %413 = vmatpush1.msra.mxu0 0.0
        %414 = vmatprep.subr.mxu0 0.0
        %415 = vmatpush1.msra.mxu0 0.0
        %416 = vmatprep.subr.mxu0 0.0
        %417 = vmatpush1.msra.mxu0 0.0
        %418 = vmatprep.subr.mxu0 0.0
        %419 = vmatpush1.msra.mxu0 0.0
        %420 = vmatprep.subr.mxu0 0.0
        %421 = vmatpush1.msra.mxu0 0.0
        %422 = vmatprep.subr.mxu0 0.0
        %423 = vmatpush1.msra.mxu0 0.0
        %424 = vmatprep.subr.mxu0 0.0
        %425 = vmatpush1.msra.mxu0 %v230
        %426 = vmatprep.subr.mxu0 0.0
        %427 = vmatpush1.msra.mxu0 %v229
        %428 = vmatprep.subr.mxu0 0.0
        %429 = vmatpush1.msra.mxu0 %v228
        %430 = vmatprep.subr.mxu0 0.0
        %431 = vmatpush1.msra.mxu0 %v227
        %432 = vmatprep.subr.mxu0 0.0
        %433 = vmatpush2.msra.mxu0 0.0
        %434 = vmatprep.subr.mxu0 0.0
        %435 = vmatpush2.msra.mxu0 0.0
        %436 = vmatprep.subr.mxu0 0.0
        %437 = vmatpush2.msra.mxu0 0.0
        %438 = vmatprep.subr.mxu0 0.0
        %439 = vmatpush2.msra.mxu0 0.0
        %440 = vmatprep.subr.mxu0 0.0
        %441 = vmatpush2.msra.mxu0 0.0
        %442 = vmatprep.subr.mxu0 0.0
        %443 = vmatpush2.msra.mxu0 0.0
        %444 = vmatprep.subr.mxu0 0.0
        %445 = vmatpush2.msra.mxu0 0.0
        %446 = vmatprep.subr.mxu0 0.0
        %447 = vmatpush2.msra.mxu0 0.0
        %448 = vmatprep.subr.mxu0 0.0
        %449 = vmatpush2.msra.mxu0 0.0
        %450 = vmatprep.subr.mxu0 0.0
        %451 = vmatpush2.msra.mxu0 0.0
        %452 = vmatprep.subr.mxu0 0.0
        %453 = vmatpush2.msra.mxu0 0.0
        %454 = vmatprep.subr.mxu0 0.0
        %455 = vmatpush2.msra.mxu0 0.0
        %456 = vmatprep.subr.mxu0 0.0
        %457 = vmatpush2.msra.mxu0 0.0
        %458 = vmatprep.subr.mxu0 0.0
        %459 = vmatpush2.msra.mxu0 0.0
        %460 = vmatprep.subr.mxu0 0.0
        %461 = vmatpush2.msra.mxu0 0.0
        %462 = vmatprep.subr.mxu0 0.0
        %463 = vmatpush2.msra.mxu0 0.0
        %464 = vmatprep.mubr.f32.mxu0 0.0
        %465 = vmatmul.mubr.f32.gmra.mxu0 %v398
        %v466 = vpop.f32.mrf.mxu0
        %v467 = vadd.f32 0.0, %v466
        %v468 = vpop.f32.mrf.mxu0
        %469 = vdwg.mxu0
        %v470 = vrcp.pop %v467
        %v471 = vmul.f32 %v394, %v470
        %vm472 = vcmask 60416
        %473 = vst.msk [vmem:[%s215] sm:$0xf] %vm472, %v471
        %v474 = vld [vmem:[%s224] sm:$0xf]
        %476 = vrot.lane.b32.xlu0 %v474, 96
        %v477 = vpop.permute.xlu0 %476
        %v478 = vsel %vm242, %v477, 0
        %480 = vmatprep.subr.mxu0 0.0
        %481 = vmatpush1.msra.mxu0 0.0
        %482 = vmatprep.subr.mxu0 0.0
        %483 = vmatpush1.msra.mxu0 0.0
        %484 = vmatprep.subr.mxu0 0.0
        %485 = vmatpush1.msra.mxu0 0.0
        %486 = vmatprep.subr.mxu0 0.0
        %487 = vmatpush1.msra.mxu0 0.0
        %488 = vmatprep.subr.mxu0 0.0
        %489 = vmatpush1.msra.mxu0 0.0
        %490 = vmatprep.subr.mxu0 0.0
        %491 = vmatpush1.msra.mxu0 0.0
        %492 = vmatprep.subr.mxu0 0.0
        %493 = vmatpush1.msra.mxu0 0.0
        %494 = vmatprep.subr.mxu0 0.0
        %495 = vmatpush1.msra.mxu0 0.0
        %496 = vmatprep.subr.mxu0 0.0
        %497 = vmatpush1.msra.mxu0 0.0
        %498 = vmatprep.subr.mxu0 0.0
        %499 = vmatpush1.msra.mxu0 0.0
        %500 = vmatprep.subr.mxu0 0.0
        %501 = vmatpush1.msra.mxu0 0.0
        %502 = vmatprep.subr.mxu0 0.0
        %503 = vmatpush1.msra.mxu0 0.0
        %504 = vmatprep.subr.mxu0 0.0
        %505 = vmatpush1.msra.mxu0 0.0
        %506 = vmatprep.subr.mxu0 0.0
        %507 = vmatpush1.msra.mxu0 0.0
        %508 = vmatprep.subr.mxu0 0.0
        %509 = vmatpush1.msra.mxu0 0.0
        %510 = vmatprep.subr.mxu0 0.0
        %511 = vmatpush1.msra.mxu0 %v478
        %512 = vmatprep.subr.mxu0 0.0
        %513 = vmatpush2.msra.mxu0 0.0
        %514 = vmatprep.subr.mxu0 0.0
        %515 = vmatpush2.msra.mxu0 0.0
        %516 = vmatprep.subr.mxu0 0.0
        %517 = vmatpush2.msra.mxu0 0.0
        %518 = vmatprep.subr.mxu0 0.0
        %519 = vmatpush2.msra.mxu0 0.0
        %520 = vmatprep.subr.mxu0 0.0
        %521 = vmatpush2.msra.mxu0 0.0
        %522 = vmatprep.subr.mxu0 0.0
        %523 = vmatpush2.msra.mxu0 0.0
        %524 = vmatprep.subr.mxu0 0.0
        %525 = vmatpush2.msra.mxu0 0.0
        %526 = vmatprep.subr.mxu0 0.0
        %527 = vmatpush2.msra.mxu0 0.0
        %528 = vmatprep.subr.mxu0 0.0
        %529 = vmatpush2.msra.mxu0 0.0
        %530 = vmatprep.subr.mxu0 0.0
        %531 = vmatpush2.msra.mxu0 0.0
        %532 = vmatprep.subr.mxu0 0.0
        %533 = vmatpush2.msra.mxu0 0.0
        %534 = vmatprep.subr.mxu0 0.0
        %535 = vmatpush2.msra.mxu0 0.0
        %536 = vmatprep.subr.mxu0 0.0
        %537 = vmatpush2.msra.mxu0 0.0
        %538 = vmatprep.subr.mxu0 0.0
        %539 = vmatpush2.msra.mxu0 0.0
        %540 = vmatprep.subr.mxu0 0.0
        %541 = vmatpush2.msra.mxu0 0.0
        %542 = vmatprep.subr.mxu0 0.0
        %543 = vmatpush2.msra.mxu0 0.0
        %544 = vmatprep.mubr.f32.mxu0 0.0
        %545 = vmatmul.mubr.f32.gmra.mxu0 %v240
        %v546 = vpop.f32.mrf.mxu0
        %v547 = vadd.f32 %v235, %v546
        %v548 = vpop.f32.mrf.mxu0
        %549 = vdwg.mxu0
        %v550 = vxor.u32 %v547, 2147483648
        %v551 = vmul.f32 %v550, 1.442695
        %v552 = vpow.pop %v551
        %v553 = vadd.f32 %v552, 1.0
        %v554 = vrcp.pop %v553
        %v555 = vmul.f32 1.0, %v554
        %557 = vrot.lane.b32.xlu0 %v555, 32
        %v558 = vpop.permute.xlu0 %557
        %v560 = vmul.f32 %v474, %v558
        %562 = vrot.lane.b32.xlu0 %v560, 96
        %v563 = vpop.permute.xlu0 %562
        %v564 = vsel %vm323, %v563, 0
        %566 = vmatprep.subr.mxu0 0.0
        %567 = vmatpush1.msra.mxu0 0.0
        %568 = vmatprep.subr.mxu0 0.0
        %569 = vmatpush1.msra.mxu0 0.0
        %570 = vmatprep.subr.mxu0 0.0
        %571 = vmatpush1.msra.mxu0 0.0
        %572 = vmatprep.subr.mxu0 0.0
        %573 = vmatpush1.msra.mxu0 0.0
        %574 = vmatprep.subr.mxu0 0.0
        %575 = vmatpush1.msra.mxu0 0.0
        %576 = vmatprep.subr.mxu0 0.0
        %577 = vmatpush1.msra.mxu0 0.0
        %578 = vmatprep.subr.mxu0 0.0
        %579 = vmatpush1.msra.mxu0 0.0
        %580 = vmatprep.subr.mxu0 0.0
        %581 = vmatpush1.msra.mxu0 0.0
        %582 = vmatprep.subr.mxu0 0.0
        %583 = vmatpush1.msra.mxu0 0.0
        %584 = vmatprep.subr.mxu0 0.0
        %585 = vmatpush1.msra.mxu0 0.0
        %586 = vmatprep.subr.mxu0 0.0
        %587 = vmatpush1.msra.mxu0 0.0
        %588 = vmatprep.subr.mxu0 0.0
        %589 = vmatpush1.msra.mxu0 0.0
        %590 = vmatprep.subr.mxu0 0.0
        %591 = vmatpush1.msra.mxu0 %v230
        %592 = vmatprep.subr.mxu0 0.0
        %593 = vmatpush1.msra.mxu0 %v229
        %594 = vmatprep.subr.mxu0 0.0
        %595 = vmatpush1.msra.mxu0 %v228
        %596 = vmatprep.subr.mxu0 0.0
        %597 = vmatpush1.msra.mxu0 %v227
        %598 = vmatprep.subr.mxu0 0.0
        %599 = vmatpush2.msra.mxu0 0.0
        %600 = vmatprep.subr.mxu0 0.0
        %601 = vmatpush2.msra.mxu0 0.0
        %602 = vmatprep.subr.mxu0 0.0
        %603 = vmatpush2.msra.mxu0 0.0
        %604 = vmatprep.subr.mxu0 0.0
        %605 = vmatpush2.msra.mxu0 0.0
        %606 = vmatprep.subr.mxu0 0.0
        %607 = vmatpush2.msra.mxu0 0.0
        %608 = vmatprep.subr.mxu0 0.0
        %609 = vmatpush2.msra.mxu0 0.0
        %610 = vmatprep.subr.mxu0 0.0
        %611 = vmatpush2.msra.mxu0 0.0
        %612 = vmatprep.subr.mxu0 0.0
        %613 = vmatpush2.msra.mxu0 0.0
        %614 = vmatprep.subr.mxu0 0.0
        %615 = vmatpush2.msra.mxu0 0.0
        %616 = vmatprep.subr.mxu0 0.0
        %617 = vmatpush2.msra.mxu0 0.0
        %618 = vmatprep.subr.mxu0 0.0
        %619 = vmatpush2.msra.mxu0 0.0
        %620 = vmatprep.subr.mxu0 0.0
        %621 = vmatpush2.msra.mxu0 0.0
        %622 = vmatprep.subr.mxu0 0.0
        %623 = vmatpush2.msra.mxu0 0.0
        %624 = vmatprep.subr.mxu0 0.0
        %625 = vmatpush2.msra.mxu0 0.0
        %626 = vmatprep.subr.mxu0 0.0
        %627 = vmatpush2.msra.mxu0 0.0
        %628 = vmatprep.subr.mxu0 0.0
        %629 = vmatpush2.msra.mxu0 0.0
        %630 = vmatprep.mubr.f32.mxu0 0.0
        %631 = vmatmul.mubr.f32.gmra.mxu0 %v564
        %v632 = vpop.f32.mrf.mxu0
        %v633 = vadd.f32 0.0, %v632
        %v634 = vpop.f32.mrf.mxu0
        %635 = vdwg.mxu0
        %v636 = vsel %vm323, %v555, 0
        %638 = vmatprep.subr.mxu0 0.0
        %639 = vmatpush1.msra.mxu0 0.0
        %640 = vmatprep.subr.mxu0 0.0
        %641 = vmatpush1.msra.mxu0 0.0
        %642 = vmatprep.subr.mxu0 0.0
        %643 = vmatpush1.msra.mxu0 0.0
        %644 = vmatprep.subr.mxu0 0.0
        %645 = vmatpush1.msra.mxu0 0.0
        %646 = vmatprep.subr.mxu0 0.0
        %647 = vmatpush1.msra.mxu0 0.0
        %648 = vmatprep.subr.mxu0 0.0
        %649 = vmatpush1.msra.mxu0 0.0
        %650 = vmatprep.subr.mxu0 0.0
        %651 = vmatpush1.msra.mxu0 0.0
        %652 = vmatprep.subr.mxu0 0.0
        %653 = vmatpush1.msra.mxu0 0.0
        %654 = vmatprep.subr.mxu0 0.0
        %655 = vmatpush1.msra.mxu0 0.0
        %656 = vmatprep.subr.mxu0 0.0
        %657 = vmatpush1.msra.mxu0 0.0
        %658 = vmatprep.subr.mxu0 0.0
        %659 = vmatpush1.msra.mxu0 0.0
        %660 = vmatprep.subr.mxu0 0.0
        %661 = vmatpush1.msra.mxu0 0.0
        %662 = vmatprep.subr.mxu0 0.0
        %663 = vmatpush1.msra.mxu0 %v230
        %664 = vmatprep.subr.mxu0 0.0
        %665 = vmatpush1.msra.mxu0 %v229
        %666 = vmatprep.subr.mxu0 0.0
        %667 = vmatpush1.msra.mxu0 %v228
        %668 = vmatprep.subr.mxu0 0.0
        %669 = vmatpush1.msra.mxu0 %v227
        %670 = vmatprep.subr.mxu0 0.0
        %671 = vmatpush2.msra.mxu0 0.0
        %672 = vmatprep.subr.mxu0 0.0
        %673 = vmatpush2.msra.mxu0 0.0
        %674 = vmatprep.subr.mxu0 0.0
        %675 = vmatpush2.msra.mxu0 0.0
        %676 = vmatprep.subr.mxu0 0.0
        %677 = vmatpush2.msra.mxu0 0.0
        %678 = vmatprep.subr.mxu0 0.0
        %679 = vmatpush2.msra.mxu0 0.0
        %680 = vmatprep.subr.mxu0 0.0
        %681 = vmatpush2.msra.mxu0 0.0
        %682 = vmatprep.subr.mxu0 0.0
        %683 = vmatpush2.msra.mxu0 0.0
        %684 = vmatprep.subr.mxu0 0.0
        %685 = vmatpush2.msra.mxu0 0.0
        %686 = vmatprep.subr.mxu0 0.0
        %687 = vmatpush2.msra.mxu0 0.0
        %688 = vmatprep.subr.mxu0 0.0
        %689 = vmatpush2.msra.mxu0 0.0
        %690 = vmatprep.subr.mxu0 0.0
        %691 = vmatpush2.msra.mxu0 0.0
        %692 = vmatprep.subr.mxu0 0.0
        %693 = vmatpush2.msra.mxu0 0.0
        %694 = vmatprep.subr.mxu0 0.0
        %695 = vmatpush2.msra.mxu0 0.0
        %696 = vmatprep.subr.mxu0 0.0
        %697 = vmatpush2.msra.mxu0 0.0
        %698 = vmatprep.subr.mxu0 0.0
        %699 = vmatpush2.msra.mxu0 0.0
        %700 = vmatprep.subr.mxu0 0.0
        %701 = vmatpush2.msra.mxu0 0.0
        %702 = vmatprep.mubr.f32.mxu0 0.0
        %703 = vmatmul.mubr.f32.gmra.mxu0 %v636
        %v704 = vpop.f32.mrf.mxu0
        %v705 = vadd.f32 0.0, %v704
        %v706 = vpop.f32.mrf.mxu0
        %707 = vdwg.mxu0
        %v708 = vrcp.pop %v705
        %v709 = vmul.f32 %v633, %v708
        %711 = vrot.lane.b32.xlu0 %v709, 8
        %v712 = vpop.permute.xlu0 %711
        %vm714 = vcmask 126016
        %715 = vst.msk [vmem:[%s215] sm:$0xf] %vm714, %v712
        %v716 = vld [vmem:[%s224] sm:$0xf]
        %718 = vrot.lane.b32.xlu0 %v716, 64
        %v719 = vpop.permute.xlu0 %718
        %v720 = vsel %vm242, %v719, 0
        %722 = vmatprep.subr.mxu0 0.0
        %723 = vmatpush1.msra.mxu0 0.0
        %724 = vmatprep.subr.mxu0 0.0
        %725 = vmatpush1.msra.mxu0 0.0
        %726 = vmatprep.subr.mxu0 0.0
        %727 = vmatpush1.msra.mxu0 0.0
        %728 = vmatprep.subr.mxu0 0.0
        %729 = vmatpush1.msra.mxu0 0.0
        %730 = vmatprep.subr.mxu0 0.0
        %731 = vmatpush1.msra.mxu0 0.0
        %732 = vmatprep.subr.mxu0 0.0
        %733 = vmatpush1.msra.mxu0 0.0
        %734 = vmatprep.subr.mxu0 0.0
        %735 = vmatpush1.msra.mxu0 0.0
        %736 = vmatprep.subr.mxu0 0.0
        %737 = vmatpush1.msra.mxu0 0.0
        %738 = vmatprep.subr.mxu0 0.0
        %739 = vmatpush1.msra.mxu0 0.0
        %740 = vmatprep.subr.mxu0 0.0
        %741 = vmatpush1.msra.mxu0 0.0
        %742 = vmatprep.subr.mxu0 0.0
        %743 = vmatpush1.msra.mxu0 0.0
        %744 = vmatprep.subr.mxu0 0.0
        %745 = vmatpush1.msra.mxu0 0.0
        %746 = vmatprep.subr.mxu0 0.0
        %747 = vmatpush1.msra.mxu0 0.0
        %748 = vmatprep.subr.mxu0 0.0
        %749 = vmatpush1.msra.mxu0 0.0
        %750 = vmatprep.subr.mxu0 0.0
        %751 = vmatpush1.msra.mxu0 0.0
        %752 = vmatprep.subr.mxu0 0.0
        %753 = vmatpush1.msra.mxu0 %v720
        %754 = vmatprep.subr.mxu0 0.0
        %755 = vmatpush2.msra.mxu0 0.0
        %756 = vmatprep.subr.mxu0 0.0
        %757 = vmatpush2.msra.mxu0 0.0
        %758 = vmatprep.subr.mxu0 0.0
        %759 = vmatpush2.msra.mxu0 0.0
        %760 = vmatprep.subr.mxu0 0.0
        %761 = vmatpush2.msra.mxu0 0.0
        %762 = vmatprep.subr.mxu0 0.0
        %763 = vmatpush2.msra.mxu0 0.0
        %764 = vmatprep.subr.mxu0 0.0
        %765 = vmatpush2.msra.mxu0 0.0
        %766 = vmatprep.subr.mxu0 0.0
        %767 = vmatpush2.msra.mxu0 0.0
        %768 = vmatprep.subr.mxu0 0.0
        %769 = vmatpush2.msra.mxu0 0.0
        %770 = vmatprep.subr.mxu0 0.0
        %771 = vmatpush2.msra.mxu0 0.0
        %772 = vmatprep.subr.mxu0 0.0
        %773 = vmatpush2.msra.mxu0 0.0
        %774 = vmatprep.subr.mxu0 0.0
        %775 = vmatpush2.msra.mxu0 0.0
        %776 = vmatprep.subr.mxu0 0.0
        %777 = vmatpush2.msra.mxu0 0.0
        %778 = vmatprep.subr.mxu0 0.0
        %779 = vmatpush2.msra.mxu0 0.0
        %780 = vmatprep.subr.mxu0 0.0
        %781 = vmatpush2.msra.mxu0 0.0
        %782 = vmatprep.subr.mxu0 0.0
        %783 = vmatpush2.msra.mxu0 0.0
        %784 = vmatprep.subr.mxu0 0.0
        %785 = vmatpush2.msra.mxu0 0.0
        %786 = vmatprep.mubr.f32.mxu0 0.0
        %787 = vmatmul.mubr.f32.gmra.mxu0 %v240
        %v788 = vpop.f32.mrf.mxu0
        %v789 = vadd.f32 %v235, %v788
        %v790 = vpop.f32.mrf.mxu0
        %791 = vdwg.mxu0
        %v792 = vxor.u32 %v789, 2147483648
        %v793 = vmul.f32 %v792, 1.442695
        %v794 = vpow.pop %v793
        %v795 = vadd.f32 %v794, 1.0
        %v796 = vrcp.pop %v795
        %v797 = vmul.f32 1.0, %v796
        %799 = vrot.lane.b32.xlu0 %v797, 64
        %v800 = vpop.permute.xlu0 %799
        %v802 = vmul.f32 %v716, %v800
        %804 = vrot.lane.b32.xlu0 %v802, 64
        %v805 = vpop.permute.xlu0 %804
        %v806 = vsel %vm323, %v805, 0
        %808 = vmatprep.subr.mxu0 0.0
        %809 = vmatpush1.msra.mxu0 0.0
        %810 = vmatprep.subr.mxu0 0.0
        %811 = vmatpush1.msra.mxu0 0.0
        %812 = vmatprep.subr.mxu0 0.0
        %813 = vmatpush1.msra.mxu0 0.0
        %814 = vmatprep.subr.mxu0 0.0
        %815 = vmatpush1.msra.mxu0 0.0
        %816 = vmatprep.subr.mxu0 0.0
        %817 = vmatpush1.msra.mxu0 0.0
        %818 = vmatprep.subr.mxu0 0.0
        %819 = vmatpush1.msra.mxu0 0.0
        %820 = vmatprep.subr.mxu0 0.0
        %821 = vmatpush1.msra.mxu0 0.0
        %822 = vmatprep.subr.mxu0 0.0
        %823 = vmatpush1.msra.mxu0 0.0
        %824 = vmatprep.subr.mxu0 0.0
        %825 = vmatpush1.msra.mxu0 0.0
        %826 = vmatprep.subr.mxu0 0.0
        %827 = vmatpush1.msra.mxu0 0.0
        %828 = vmatprep.subr.mxu0 0.0
        %829 = vmatpush1.msra.mxu0 0.0
        %830 = vmatprep.subr.mxu0 0.0
        %831 = vmatpush1.msra.mxu0 0.0
        %832 = vmatprep.subr.mxu0 0.0
        %833 = vmatpush1.msra.mxu0 %v230
        %834 = vmatprep.subr.mxu0 0.0
        %835 = vmatpush1.msra.mxu0 %v229
        %836 = vmatprep.subr.mxu0 0.0
        %837 = vmatpush1.msra.mxu0 %v228
        %838 = vmatprep.subr.mxu0 0.0
        %839 = vmatpush1.msra.mxu0 %v227
        %840 = vmatprep.subr.mxu0 0.0
        %841 = vmatpush2.msra.mxu0 0.0
        %842 = vmatprep.subr.mxu0 0.0
        %843 = vmatpush2.msra.mxu0 0.0
        %844 = vmatprep.subr.mxu0 0.0
        %845 = vmatpush2.msra.mxu0 0.0
        %846 = vmatprep.subr.mxu0 0.0
        %847 = vmatpush2.msra.mxu0 0.0
        %848 = vmatprep.subr.mxu0 0.0
        %849 = vmatpush2.msra.mxu0 0.0
        %850 = vmatprep.subr.mxu0 0.0
        %851 = vmatpush2.msra.mxu0 0.0
        %852 = vmatprep.subr.mxu0 0.0
        %853 = vmatpush2.msra.mxu0 0.0
        %854 = vmatprep.subr.mxu0 0.0
        %855 = vmatpush2.msra.mxu0 0.0
        %856 = vmatprep.subr.mxu0 0.0
        %857 = vmatpush2.msra.mxu0 0.0
        %858 = vmatprep.subr.mxu0 0.0
        %859 = vmatpush2.msra.mxu0 0.0
        %860 = vmatprep.subr.mxu0 0.0
        %861 = vmatpush2.msra.mxu0 0.0
        %862 = vmatprep.subr.mxu0 0.0
        %863 = vmatpush2.msra.mxu0 0.0
        %864 = vmatprep.subr.mxu0 0.0
        %865 = vmatpush2.msra.mxu0 0.0
        %866 = vmatprep.subr.mxu0 0.0
        %867 = vmatpush2.msra.mxu0 0.0
        %868 = vmatprep.subr.mxu0 0.0
        %869 = vmatpush2.msra.mxu0 0.0
        %870 = vmatprep.subr.mxu0 0.0
        %871 = vmatpush2.msra.mxu0 0.0
        %872 = vmatprep.mubr.f32.mxu0 0.0
        %873 = vmatmul.mubr.f32.gmra.mxu0 %v806
        %v874 = vpop.f32.mrf.mxu0
        %v875 = vadd.f32 0.0, %v874
        %v876 = vpop.f32.mrf.mxu0
        %877 = vdwg.mxu0
        %v878 = vsel %vm323, %v797, 0
        %880 = vmatprep.subr.mxu0 0.0
        %881 = vmatpush1.msra.mxu0 0.0
        %882 = vmatprep.subr.mxu0 0.0
        %883 = vmatpush1.msra.mxu0 0.0
        %884 = vmatprep.subr.mxu0 0.0
        %885 = vmatpush1.msra.mxu0 0.0
        %886 = vmatprep.subr.mxu0 0.0
        %887 = vmatpush1.msra.mxu0 0.0
        %888 = vmatprep.subr.mxu0 0.0
        %889 = vmatpush1.msra.mxu0 0.0
        %890 = vmatprep.subr.mxu0 0.0
        %891 = vmatpush1.msra.mxu0 0.0
        %892 = vmatprep.subr.mxu0 0.0
        %893 = vmatpush1.msra.mxu0 0.0
        %894 = vmatprep.subr.mxu0 0.0
        %895 = vmatpush1.msra.mxu0 0.0
        %896 = vmatprep.subr.mxu0 0.0
        %897 = vmatpush1.msra.mxu0 0.0
        %898 = vmatprep.subr.mxu0 0.0
        %899 = vmatpush1.msra.mxu0 0.0
        %900 = vmatprep.subr.mxu0 0.0
        %901 = vmatpush1.msra.mxu0 0.0
        %902 = vmatprep.subr.mxu0 0.0
        %903 = vmatpush1.msra.mxu0 0.0
        %904 = vmatprep.subr.mxu0 0.0
        %905 = vmatpush1.msra.mxu0 %v230
        %906 = vmatprep.subr.mxu0 0.0
        %907 = vmatpush1.msra.mxu0 %v229
        %908 = vmatprep.subr.mxu0 0.0
        %909 = vmatpush1.msra.mxu0 %v228
        %910 = vmatprep.subr.mxu0 0.0
        %911 = vmatpush1.msra.mxu0 %v227
        %912 = vmatprep.subr.mxu0 0.0
        %913 = vmatpush2.msra.mxu0 0.0
        %914 = vmatprep.subr.mxu0 0.0
        %915 = vmatpush2.msra.mxu0 0.0
        %916 = vmatprep.subr.mxu0 0.0
        %917 = vmatpush2.msra.mxu0 0.0
        %918 = vmatprep.subr.mxu0 0.0
        %919 = vmatpush2.msra.mxu0 0.0
        %920 = vmatprep.subr.mxu0 0.0
        %921 = vmatpush2.msra.mxu0 0.0
        %922 = vmatprep.subr.mxu0 0.0
        %923 = vmatpush2.msra.mxu0 0.0
        %924 = vmatprep.subr.mxu0 0.0
        %925 = vmatpush2.msra.mxu0 0.0
        %926 = vmatprep.subr.mxu0 0.0
        %927 = vmatpush2.msra.mxu0 0.0
        %928 = vmatprep.subr.mxu0 0.0
        %929 = vmatpush2.msra.mxu0 0.0
        %930 = vmatprep.subr.mxu0 0.0
        %931 = vmatpush2.msra.mxu0 0.0
        %932 = vmatprep.subr.mxu0 0.0
        %933 = vmatpush2.msra.mxu0 0.0
        %934 = vmatprep.subr.mxu0 0.0
        %935 = vmatpush2.msra.mxu0 0.0
        %936 = vmatprep.subr.mxu0 0.0
        %937 = vmatpush2.msra.mxu0 0.0
        %938 = vmatprep.subr.mxu0 0.0
        %939 = vmatpush2.msra.mxu0 0.0
        %940 = vmatprep.subr.mxu0 0.0
        %941 = vmatpush2.msra.mxu0 0.0
        %942 = vmatprep.subr.mxu0 0.0
        %943 = vmatpush2.msra.mxu0 0.0
        %944 = vmatprep.mubr.f32.mxu0 0.0
        %945 = vmatmul.mubr.f32.gmra.mxu0 %v878
        %v946 = vpop.f32.mrf.mxu0
        %v947 = vadd.f32 0.0, %v946
        %v948 = vpop.f32.mrf.mxu0
        %949 = vdwg.mxu0
        %v950 = vrcp.pop %v947
        %v951 = vmul.f32 %v875, %v950
        %953 = vrot.lane.b32.xlu0 %v951, 16
        %v954 = vpop.permute.xlu0 %953
        %vm956 = vcmask 191616
        %957 = vst.msk [vmem:[%s215] sm:$0xf] %vm956, %v954
        %v958 = vld [vmem:[%s224] sm:$0xf]
        %960 = vrot.lane.b32.xlu0 %v958, 32
        %v961 = vpop.permute.xlu0 %960
        %v962 = vsel %vm242, %v961, 0
        %964 = vmatprep.subr.mxu0 0.0
        %965 = vmatpush1.msra.mxu0 0.0
        %966 = vmatprep.subr.mxu0 0.0
        %967 = vmatpush1.msra.mxu0 0.0
        %968 = vmatprep.subr.mxu0 0.0
        %969 = vmatpush1.msra.mxu0 0.0
        %970 = vmatprep.subr.mxu0 0.0
        %971 = vmatpush1.msra.mxu0 0.0
        %972 = vmatprep.subr.mxu0 0.0
        %973 = vmatpush1.msra.mxu0 0.0
        %974 = vmatprep.subr.mxu0 0.0
        %975 = vmatpush1.msra.mxu0 0.0
        %976 = vmatprep.subr.mxu0 0.0
        %977 = vmatpush1.msra.mxu0 0.0
        %978 = vmatprep.subr.mxu0 0.0
        %979 = vmatpush1.msra.mxu0 0.0
        %980 = vmatprep.subr.mxu0 0.0
        %981 = vmatpush1.msra.mxu0 0.0
        %982 = vmatprep.subr.mxu0 0.0
        %983 = vmatpush1.msra.mxu0 0.0
        %984 = vmatprep.subr.mxu0 0.0
        %985 = vmatpush1.msra.mxu0 0.0
        %986 = vmatprep.subr.mxu0 0.0
        %987 = vmatpush1.msra.mxu0 0.0
        %988 = vmatprep.subr.mxu0 0.0
        %989 = vmatpush1.msra.mxu0 0.0
        %990 = vmatprep.subr.mxu0 0.0
        %991 = vmatpush1.msra.mxu0 0.0
        %992 = vmatprep.subr.mxu0 0.0
        %993 = vmatpush1.msra.mxu0 0.0
        %994 = vmatprep.subr.mxu0 0.0
        %995 = vmatpush1.msra.mxu0 %v962
        %996 = vmatprep.subr.mxu0 0.0
        %997 = vmatpush2.msra.mxu0 0.0
        %998 = vmatprep.subr.mxu0 0.0
        %999 = vmatpush2.msra.mxu0 0.0
        %1000 = vmatprep.subr.mxu0 0.0
        %1001 = vmatpush2.msra.mxu0 0.0
        %1002 = vmatprep.subr.mxu0 0.0
        %1003 = vmatpush2.msra.mxu0 0.0
        %1004 = vmatprep.subr.mxu0 0.0
        %1005 = vmatpush2.msra.mxu0 0.0
        %1006 = vmatprep.subr.mxu0 0.0
        %1007 = vmatpush2.msra.mxu0 0.0
        %1008 = vmatprep.subr.mxu0 0.0
        %1009 = vmatpush2.msra.mxu0 0.0
        %1010 = vmatprep.subr.mxu0 0.0
        %1011 = vmatpush2.msra.mxu0 0.0
        %1012 = vmatprep.subr.mxu0 0.0
        %1013 = vmatpush2.msra.mxu0 0.0
        %1014 = vmatprep.subr.mxu0 0.0
        %1015 = vmatpush2.msra.mxu0 0.0
        %1016 = vmatprep.subr.mxu0 0.0
        %1017 = vmatpush2.msra.mxu0 0.0
        %1018 = vmatprep.subr.mxu0 0.0
        %1019 = vmatpush2.msra.mxu0 0.0
        %1020 = vmatprep.subr.mxu0 0.0
        %1021 = vmatpush2.msra.mxu0 0.0
        %1022 = vmatprep.subr.mxu0 0.0
        %1023 = vmatpush2.msra.mxu0 0.0
        %1024 = vmatprep.subr.mxu0 0.0
        %1025 = vmatpush2.msra.mxu0 0.0
        %1026 = vmatprep.subr.mxu0 0.0
        %1027 = vmatpush2.msra.mxu0 0.0
        %1028 = vmatprep.mubr.f32.mxu0 0.0
        %1029 = vmatmul.mubr.f32.gmra.mxu0 %v240
        %v1030 = vpop.f32.mrf.mxu0
        %v1031 = vadd.f32 %v235, %v1030
        %v1032 = vpop.f32.mrf.mxu0
        %1033 = vdwg.mxu0
        %v1034 = vxor.u32 %v1031, 2147483648
        %v1035 = vmul.f32 %v1034, 1.442695
        %v1036 = vpow.pop %v1035
        %v1037 = vadd.f32 %v1036, 1.0
        %v1038 = vrcp.pop %v1037
        %v1039 = vmul.f32 1.0, %v1038
        %1041 = vrot.lane.b32.xlu0 %v1039, 96
        %v1042 = vpop.permute.xlu0 %1041
        %v1044 = vmul.f32 %v958, %v1042
        %1046 = vrot.lane.b32.xlu0 %v1044, 32
        %v1047 = vpop.permute.xlu0 %1046
        %v1048 = vsel %vm323, %v1047, 0
        %1050 = vmatprep.subr.mxu0 0.0
        %1051 = vmatpush1.msra.mxu0 0.0
        %1052 = vmatprep.subr.mxu0 0.0
        %1053 = vmatpush1.msra.mxu0 0.0
        %1054 = vmatprep.subr.mxu0 0.0
        %1055 = vmatpush1.msra.mxu0 0.0
        %1056 = vmatprep.subr.mxu0 0.0
        %1057 = vmatpush1.msra.mxu0 0.0
        %1058 = vmatprep.subr.mxu0 0.0
        %1059 = vmatpush1.msra.mxu0 0.0
        %1060 = vmatprep.subr.mxu0 0.0
        %1061 = vmatpush1.msra.mxu0 0.0
        %1062 = vmatprep.subr.mxu0 0.0
        %1063 = vmatpush1.msra.mxu0 0.0
        %1064 = vmatprep.subr.mxu0 0.0
        %1065 = vmatpush1.msra.mxu0 0.0
        %1066 = vmatprep.subr.mxu0 0.0
        %1067 = vmatpush1.msra.mxu0 0.0
        %1068 = vmatprep.subr.mxu0 0.0
        %1069 = vmatpush1.msra.mxu0 0.0
        %1070 = vmatprep.subr.mxu0 0.0
        %1071 = vmatpush1.msra.mxu0 0.0
        %1072 = vmatprep.subr.mxu0 0.0
        %1073 = vmatpush1.msra.mxu0 0.0
        %1074 = vmatprep.subr.mxu0 0.0
        %1075 = vmatpush1.msra.mxu0 %v230
        %1076 = vmatprep.subr.mxu0 0.0
        %1077 = vmatpush1.msra.mxu0 %v229
        %1078 = vmatprep.subr.mxu0 0.0
        %1079 = vmatpush1.msra.mxu0 %v228
        %1080 = vmatprep.subr.mxu0 0.0
        %1081 = vmatpush1.msra.mxu0 %v227
        %1082 = vmatprep.subr.mxu0 0.0
        %1083 = vmatpush2.msra.mxu0 0.0
        %1084 = vmatprep.subr.mxu0 0.0
        %1085 = vmatpush2.msra.mxu0 0.0
        %1086 = vmatprep.subr.mxu0 0.0
        %1087 = vmatpush2.msra.mxu0 0.0
        %1088 = vmatprep.subr.mxu0 0.0
        %1089 = vmatpush2.msra.mxu0 0.0
        %1090 = vmatprep.subr.mxu0 0.0
        %1091 = vmatpush2.msra.mxu0 0.0
        %1092 = vmatprep.subr.mxu0 0.0
        %1093 = vmatpush2.msra.mxu0 0.0
        %1094 = vmatprep.subr.mxu0 0.0
        %1095 = vmatpush2.msra.mxu0 0.0
        %1096 = vmatprep.subr.mxu0 0.0
        %1097 = vmatpush2.msra.mxu0 0.0
        %1098 = vmatprep.subr.mxu0 0.0
        %1099 = vmatpush2.msra.mxu0 0.0
        %1100 = vmatprep.subr.mxu0 0.0
        %1101 = vmatpush2.msra.mxu0 0.0
        %1102 = vmatprep.subr.mxu0 0.0
        %1103 = vmatpush2.msra.mxu0 0.0
        %1104 = vmatprep.subr.mxu0 0.0
        %1105 = vmatpush2.msra.mxu0 0.0
        %1106 = vmatprep.subr.mxu0 0.0
        %1107 = vmatpush2.msra.mxu0 0.0
        %1108 = vmatprep.subr.mxu0 0.0
        %1109 = vmatpush2.msra.mxu0 0.0
        %1110 = vmatprep.subr.mxu0 0.0
        %1111 = vmatpush2.msra.mxu0 0.0
        %1112 = vmatprep.subr.mxu0 0.0
        %1113 = vmatpush2.msra.mxu0 0.0
        %1114 = vmatprep.mubr.f32.mxu0 0.0
        %1115 = vmatmul.mubr.f32.gmra.mxu0 %v1048
        %v1116 = vpop.f32.mrf.mxu0
        %v1117 = vadd.f32 0.0, %v1116
        %v1118 = vpop.f32.mrf.mxu0
        %1119 = vdwg.mxu0
        %v1120 = vsel %vm323, %v1039, 0
        %1122 = vmatprep.subr.mxu0 0.0
        %1123 = vmatpush1.msra.mxu0 0.0
        %1124 = vmatprep.subr.mxu0 0.0
        %1125 = vmatpush1.msra.mxu0 0.0
        %1126 = vmatprep.subr.mxu0 0.0
        %1127 = vmatpush1.msra.mxu0 0.0
        %1128 = vmatprep.subr.mxu0 0.0
        %1129 = vmatpush1.msra.mxu0 0.0
        %1130 = vmatprep.subr.mxu0 0.0
        %1131 = vmatpush1.msra.mxu0 0.0
        %1132 = vmatprep.subr.mxu0 0.0
        %1133 = vmatpush1.msra.mxu0 0.0
        %1134 = vmatprep.subr.mxu0 0.0
        %1135 = vmatpush1.msra.mxu0 0.0
        %1136 = vmatprep.subr.mxu0 0.0
        %1137 = vmatpush1.msra.mxu0 0.0
        %1138 = vmatprep.subr.mxu0 0.0
        %1139 = vmatpush1.msra.mxu0 0.0
        %1140 = vmatprep.subr.mxu0 0.0
        %1141 = vmatpush1.msra.mxu0 0.0
        %1142 = vmatprep.subr.mxu0 0.0
        %1143 = vmatpush1.msra.mxu0 0.0
        %1144 = vmatprep.subr.mxu0 0.0
        %1145 = vmatpush1.msra.mxu0 0.0
        %1146 = vmatprep.subr.mxu0 0.0
        %1147 = vmatpush1.msra.mxu0 %v230
        %1148 = vmatprep.subr.mxu0 0.0
        %1149 = vmatpush1.msra.mxu0 %v229
        %1150 = vmatprep.subr.mxu0 0.0
        %1151 = vmatpush1.msra.mxu0 %v228
        %1152 = vmatprep.subr.mxu0 0.0
        %1153 = vmatpush1.msra.mxu0 %v227
        %1154 = vmatprep.subr.mxu0 0.0
        %1155 = vmatpush2.msra.mxu0 0.0
        %1156 = vmatprep.subr.mxu0 0.0
        %1157 = vmatpush2.msra.mxu0 0.0
        %1158 = vmatprep.subr.mxu0 0.0
        %1159 = vmatpush2.msra.mxu0 0.0
        %1160 = vmatprep.subr.mxu0 0.0
        %1161 = vmatpush2.msra.mxu0 0.0
        %1162 = vmatprep.subr.mxu0 0.0
        %1163 = vmatpush2.msra.mxu0 0.0
        %1164 = vmatprep.subr.mxu0 0.0
        %1165 = vmatpush2.msra.mxu0 0.0
        %1166 = vmatprep.subr.mxu0 0.0
        %1167 = vmatpush2.msra.mxu0 0.0
        %1168 = vmatprep.subr.mxu0 0.0
        %1169 = vmatpush2.msra.mxu0 0.0
        %1170 = vmatprep.subr.mxu0 0.0
        %1171 = vmatpush2.msra.mxu0 0.0
        %1172 = vmatprep.subr.mxu0 0.0
        %1173 = vmatpush2.msra.mxu0 0.0
        %1174 = vmatprep.subr.mxu0 0.0
        %1175 = vmatpush2.msra.mxu0 0.0
        %1176 = vmatprep.subr.mxu0 0.0
        %1177 = vmatpush2.msra.mxu0 0.0
        %1178 = vmatprep.subr.mxu0 0.0
        %1179 = vmatpush2.msra.mxu0 0.0
        %1180 = vmatprep.subr.mxu0 0.0
        %1181 = vmatpush2.msra.mxu0 0.0
        %1182 = vmatprep.subr.mxu0 0.0
        %1183 = vmatpush2.msra.mxu0 0.0
        %1184 = vmatprep.subr.mxu0 0.0
        %1185 = vmatpush2.msra.mxu0 0.0
        %1186 = vmatprep.mubr.f32.mxu0 0.0
        %1187 = vmatmul.mubr.f32.gmra.mxu0 %v1120
        %v1188 = vpop.f32.mrf.mxu0
        %v1189 = vadd.f32 0.0, %v1188
        %v1190 = vpop.f32.mrf.mxu0
        %1191 = vdwg.mxu0
        %v1192 = vrcp.pop %v1189
        %v1193 = vmul.f32 %v1117, %v1192
        %1195 = vrot.lane.b32.xlu0 %v1193, 24
        %v1196 = vpop.permute.xlu0 %1195
        %vm1198 = vcmask 257216
        %1199 = vst.msk [vmem:[%s215] sm:$0xf] %vm1198, %v1196
        %v1200 = vld [vmem:[%s224 + $0x4] sm:$0xf]
        %v1202 = vsel %vm242, %v1200, 0
        %1204 = vmatprep.subr.mxu0 0.0
        %1205 = vmatpush1.msra.mxu0 0.0
        %1206 = vmatprep.subr.mxu0 0.0
        %1207 = vmatpush1.msra.mxu0 0.0
        %1208 = vmatprep.subr.mxu0 0.0
        %1209 = vmatpush1.msra.mxu0 0.0
        %1210 = vmatprep.subr.mxu0 0.0
        %1211 = vmatpush1.msra.mxu0 0.0
        %1212 = vmatprep.subr.mxu0 0.0
        %1213 = vmatpush1.msra.mxu0 0.0
        %1214 = vmatprep.subr.mxu0 0.0
        %1215 = vmatpush1.msra.mxu0 0.0
        %1216 = vmatprep.subr.mxu0 0.0
        %1217 = vmatpush1.msra.mxu0 0.0
        %1218 = vmatprep.subr.mxu0 0.0
        %1219 = vmatpush1.msra.mxu0 0.0
        %1220 = vmatprep.subr.mxu0 0.0
        %1221 = vmatpush1.msra.mxu0 0.0
        %1222 = vmatprep.subr.mxu0 0.0
        %1223 = vmatpush1.msra.mxu0 0.0
        %1224 = vmatprep.subr.mxu0 0.0
        %1225 = vmatpush1.msra.mxu0 0.0
        %1226 = vmatprep.subr.mxu0 0.0
        %1227 = vmatpush1.msra.mxu0 0.0
        %1228 = vmatprep.subr.mxu0 0.0
        %1229 = vmatpush1.msra.mxu0 0.0
        %1230 = vmatprep.subr.mxu0 0.0
        %1231 = vmatpush1.msra.mxu0 0.0
        %1232 = vmatprep.subr.mxu0 0.0
        %1233 = vmatpush1.msra.mxu0 0.0
        %1234 = vmatprep.subr.mxu0 0.0
        %1235 = vmatpush1.msra.mxu0 %v1202
        %1236 = vmatprep.subr.mxu0 0.0
        %1237 = vmatpush2.msra.mxu0 0.0
        %1238 = vmatprep.subr.mxu0 0.0
        %1239 = vmatpush2.msra.mxu0 0.0
        %1240 = vmatprep.subr.mxu0 0.0
        %1241 = vmatpush2.msra.mxu0 0.0
        %1242 = vmatprep.subr.mxu0 0.0
        %1243 = vmatpush2.msra.mxu0 0.0
        %1244 = vmatprep.subr.mxu0 0.0
        %1245 = vmatpush2.msra.mxu0 0.0
        %1246 = vmatprep.subr.mxu0 0.0
        %1247 = vmatpush2.msra.mxu0 0.0
        %1248 = vmatprep.subr.mxu0 0.0
        %1249 = vmatpush2.msra.mxu0 0.0
        %1250 = vmatprep.subr.mxu0 0.0
        %1251 = vmatpush2.msra.mxu0 0.0
        %1252 = vmatprep.subr.mxu0 0.0
        %1253 = vmatpush2.msra.mxu0 0.0
        %1254 = vmatprep.subr.mxu0 0.0
        %1255 = vmatpush2.msra.mxu0 0.0
        %1256 = vmatprep.subr.mxu0 0.0
        %1257 = vmatpush2.msra.mxu0 0.0
        %1258 = vmatprep.subr.mxu0 0.0
        %1259 = vmatpush2.msra.mxu0 0.0
        %1260 = vmatprep.subr.mxu0 0.0
        %1261 = vmatpush2.msra.mxu0 0.0
        %1262 = vmatprep.subr.mxu0 0.0
        %1263 = vmatpush2.msra.mxu0 0.0
        %1264 = vmatprep.subr.mxu0 0.0
        %1265 = vmatpush2.msra.mxu0 0.0
        %1266 = vmatprep.subr.mxu0 0.0
        %1267 = vmatpush2.msra.mxu0 0.0
        %1268 = vmatprep.mubr.f32.mxu0 0.0
        %1269 = vmatmul.mubr.f32.gmra.mxu0 %v240
        %v1270 = vpop.f32.mrf.mxu0
        %v1271 = vadd.f32 %v235, %v1270
        %v1272 = vpop.f32.mrf.mxu0
        %1273 = vdwg.mxu0
        %v1274 = vxor.u32 %v1271, 2147483648
        %v1275 = vmul.f32 %v1274, 1.442695
        %v1276 = vpow.pop %v1275
        %v1277 = vadd.f32 %v1276, 1.0
        %v1278 = vrcp.pop %v1277
        %v1279 = vmul.f32 1.0, %v1278
        %v1280 = vmul.f32 %v1200, %v1279
        %v1282 = vsel %vm323, %v1280, 0
        %1284 = vmatprep.subr.mxu0 0.0
        %1285 = vmatpush1.msra.mxu0 0.0
        %1286 = vmatprep.subr.mxu0 0.0
        %1287 = vmatpush1.msra.mxu0 0.0
        %1288 = vmatprep.subr.mxu0 0.0
        %1289 = vmatpush1.msra.mxu0 0.0
        %1290 = vmatprep.subr.mxu0 0.0
        %1291 = vmatpush1.msra.mxu0 0.0
        %1292 = vmatprep.subr.mxu0 0.0
        %1293 = vmatpush1.msra.mxu0 0.0
        %1294 = vmatprep.subr.mxu0 0.0
        %1295 = vmatpush1.msra.mxu0 0.0
        %1296 = vmatprep.subr.mxu0 0.0
        %1297 = vmatpush1.msra.mxu0 0.0
        %1298 = vmatprep.subr.mxu0 0.0
        %1299 = vmatpush1.msra.mxu0 0.0
        %1300 = vmatprep.subr.mxu0 0.0
        %1301 = vmatpush1.msra.mxu0 0.0
        %1302 = vmatprep.subr.mxu0 0.0
        %1303 = vmatpush1.msra.mxu0 0.0
        %1304 = vmatprep.subr.mxu0 0.0
        %1305 = vmatpush1.msra.mxu0 0.0
        %1306 = vmatprep.subr.mxu0 0.0
        %1307 = vmatpush1.msra.mxu0 0.0
        %1308 = vmatprep.subr.mxu0 0.0
        %1309 = vmatpush1.msra.mxu0 %v230
        %1310 = vmatprep.subr.mxu0 0.0
        %1311 = vmatpush1.msra.mxu0 %v229
        %1312 = vmatprep.subr.mxu0 0.0
        %1313 = vmatpush1.msra.mxu0 %v228
        %1314 = vmatprep.subr.mxu0 0.0
        %1315 = vmatpush1.msra.mxu0 %v227
        %1316 = vmatprep.subr.mxu0 0.0
        %1317 = vmatpush2.msra.mxu0 0.0
        %1318 = vmatprep.subr.mxu0 0.0
        %1319 = vmatpush2.msra.mxu0 0.0
        %1320 = vmatprep.subr.mxu0 0.0
        %1321 = vmatpush2.msra.mxu0 0.0
        %1322 = vmatprep.subr.mxu0 0.0
        %1323 = vmatpush2.msra.mxu0 0.0
        %1324 = vmatprep.subr.mxu0 0.0
        %1325 = vmatpush2.msra.mxu0 0.0
        %1326 = vmatprep.subr.mxu0 0.0
        %1327 = vmatpush2.msra.mxu0 0.0
        %1328 = vmatprep.subr.mxu0 0.0
        %1329 = vmatpush2.msra.mxu0 0.0
        %1330 = vmatprep.subr.mxu0 0.0
        %1331 = vmatpush2.msra.mxu0 0.0
        %1332 = vmatprep.subr.mxu0 0.0
        %1333 = vmatpush2.msra.mxu0 0.0
        %1334 = vmatprep.subr.mxu0 0.0
        %1335 = vmatpush2.msra.mxu0 0.0
        %1336 = vmatprep.subr.mxu0 0.0
        %1337 = vmatpush2.msra.mxu0 0.0
        %1338 = vmatprep.subr.mxu0 0.0
        %1339 = vmatpush2.msra.mxu0 0.0
        %1340 = vmatprep.subr.mxu0 0.0
        %1341 = vmatpush2.msra.mxu0 0.0
        %1342 = vmatprep.subr.mxu0 0.0
        %1343 = vmatpush2.msra.mxu0 0.0
        %1344 = vmatprep.subr.mxu0 0.0
        %1345 = vmatpush2.msra.mxu0 0.0
        %1346 = vmatprep.subr.mxu0 0.0
        %1347 = vmatpush2.msra.mxu0 0.0
        %1348 = vmatprep.mubr.f32.mxu0 0.0
        %1349 = vmatmul.mubr.f32.gmra.mxu0 %v1282
        %v1350 = vpop.f32.mrf.mxu0
        %v1351 = vadd.f32 0.0, %v1350
        %v1352 = vpop.f32.mrf.mxu0
        %1353 = vdwg.mxu0
        %v1355 = vsel %vm323, %v1279, 0
        %1357 = vmatprep.subr.mxu0 0.0
        %1358 = vmatpush1.msra.mxu0 0.0
        %1359 = vmatprep.subr.mxu0 0.0
        %1360 = vmatpush1.msra.mxu0 0.0
        %1361 = vmatprep.subr.mxu0 0.0
        %1362 = vmatpush1.msra.mxu0 0.0
        %1363 = vmatprep.subr.mxu0 0.0
        %1364 = vmatpush1.msra.mxu0 0.0
        %1365 = vmatprep.subr.mxu0 0.0
        %1366 = vmatpush1.msra.mxu0 0.0
        %1367 = vmatprep.subr.mxu0 0.0
        %1368 = vmatpush1.msra.mxu0 0.0
        %1369 = vmatprep.subr.mxu0 0.0
        %1370 = vmatpush1.msra.mxu0 0.0
        %1371 = vmatprep.subr.mxu0 0.0
        %1372 = vmatpush1.msra.mxu0 0.0
        %1373 = vmatprep.subr.mxu0 0.0
        %1374 = vmatpush1.msra.mxu0 0.0
        %1375 = vmatprep.subr.mxu0 0.0
        %1376 = vmatpush1.msra.mxu0 0.0
        %1377 = vmatprep.subr.mxu0 0.0
        %1378 = vmatpush1.msra.mxu0 0.0
        %1379 = vmatprep.subr.mxu0 0.0
        %1380 = vmatpush1.msra.mxu0 0.0
        %1381 = vmatprep.subr.mxu0 0.0
        %1382 = vmatpush1.msra.mxu0 %v230
        %1383 = vmatprep.subr.mxu0 0.0
        %1384 = vmatpush1.msra.mxu0 %v229
        %1385 = vmatprep.subr.mxu0 0.0
        %1386 = vmatpush1.msra.mxu0 %v228
        %1387 = vmatprep.subr.mxu0 0.0
        %1388 = vmatpush1.msra.mxu0 %v227
        %1389 = vmatprep.subr.mxu0 0.0
        %1390 = vmatpush2.msra.mxu0 0.0
        %1391 = vmatprep.subr.mxu0 0.0
        %1392 = vmatpush2.msra.mxu0 0.0
        %1393 = vmatprep.subr.mxu0 0.0
        %1394 = vmatpush2.msra.mxu0 0.0
        %1395 = vmatprep.subr.mxu0 0.0
        %1396 = vmatpush2.msra.mxu0 0.0
        %1397 = vmatprep.subr.mxu0 0.0
        %1398 = vmatpush2.msra.mxu0 0.0
        %1399 = vmatprep.subr.mxu0 0.0
        %1400 = vmatpush2.msra.mxu0 0.0
        %1401 = vmatprep.subr.mxu0 0.0
        %1402 = vmatpush2.msra.mxu0 0.0
        %1403 = vmatprep.subr.mxu0 0.0
        %1404 = vmatpush2.msra.mxu0 0.0
        %1405 = vmatprep.subr.mxu0 0.0
        %1406 = vmatpush2.msra.mxu0 0.0
        %1407 = vmatprep.subr.mxu0 0.0
        %1408 = vmatpush2.msra.mxu0 0.0
        %1409 = vmatprep.subr.mxu0 0.0
        %1410 = vmatpush2.msra.mxu0 0.0
        %1411 = vmatprep.subr.mxu0 0.0
        %1412 = vmatpush2.msra.mxu0 0.0
        %1413 = vmatprep.subr.mxu0 0.0
        %1414 = vmatpush2.msra.mxu0 0.0
        %1415 = vmatprep.subr.mxu0 0.0
        %1416 = vmatpush2.msra.mxu0 0.0
        %1417 = vmatprep.subr.mxu0 0.0
        %1418 = vmatpush2.msra.mxu0 0.0
        %1419 = vmatprep.subr.mxu0 0.0
        %1420 = vmatpush2.msra.mxu0 0.0
        %1421 = vmatprep.mubr.f32.mxu0 0.0
        %1422 = vmatmul.mubr.f32.gmra.mxu0 %v1355
        %v1423 = vpop.f32.mrf.mxu0
        %v1424 = vadd.f32 0.0, %v1423
        %v1425 = vpop.f32.mrf.mxu0
        %1426 = vdwg.mxu0
        %v1427 = vrcp.pop %v1424
        %v1428 = vmul.f32 %v1351, %v1427
        %1430 = vrot.lane.b32.xlu0 %v1428, 32
        %v1431 = vpop.permute.xlu0 %1430
        %vm1433 = vcmask 322816
        %1434 = vst.msk [vmem:[%s215] sm:$0xf] %vm1433, %v1431
        %v1435 = vld [vmem:[%s224 + $0x4] sm:$0xf]
        %1437 = vrot.lane.b32.xlu0 %v1435, 96
        %v1438 = vpop.permute.xlu0 %1437
        %v1439 = vsel %vm242, %v1438, 0
        %1441 = vmatprep.subr.mxu0 0.0
        %1442 = vmatpush1.msra.mxu0 0.0
        %1443 = vmatprep.subr.mxu0 0.0
        %1444 = vmatpush1.msra.mxu0 0.0
        %1445 = vmatprep.subr.mxu0 0.0
        %1446 = vmatpush1.msra.mxu0 0.0
        %1447 = vmatprep.subr.mxu0 0.0
        %1448 = vmatpush1.msra.mxu0 0.0
        %1449 = vmatprep.subr.mxu0 0.0
        %1450 = vmatpush1.msra.mxu0 0.0
        %1451 = vmatprep.subr.mxu0 0.0
        %1452 = vmatpush1.msra.mxu0 0.0
        %1453 = vmatprep.subr.mxu0 0.0
        %1454 = vmatpush1.msra.mxu0 0.0
        %1455 = vmatprep.subr.mxu0 0.0
        %1456 = vmatpush1.msra.mxu0 0.0
        %1457 = vmatprep.subr.mxu0 0.0
        %1458 = vmatpush1.msra.mxu0 0.0
        %1459 = vmatprep.subr.mxu0 0.0
        %1460 = vmatpush1.msra.mxu0 0.0
        %1461 = vmatprep.subr.mxu0 0.0
        %1462 = vmatpush1.msra.mxu0 0.0
        %1463 = vmatprep.subr.mxu0 0.0
        %1464 = vmatpush1.msra.mxu0 0.0
        %1465 = vmatprep.subr.mxu0 0.0
        %1466 = vmatpush1.msra.mxu0 0.0
        %1467 = vmatprep.subr.mxu0 0.0
        %1468 = vmatpush1.msra.mxu0 0.0
        %1469 = vmatprep.subr.mxu0 0.0
        %1470 = vmatpush1.msra.mxu0 0.0
        %1471 = vmatprep.subr.mxu0 0.0
        %1472 = vmatpush1.msra.mxu0 %v1439
        %1473 = vmatprep.subr.mxu0 0.0
        %1474 = vmatpush2.msra.mxu0 0.0
        %1475 = vmatprep.subr.mxu0 0.0
        %1476 = vmatpush2.msra.mxu0 0.0
        %1477 = vmatprep.subr.mxu0 0.0
        %1478 = vmatpush2.msra.mxu0 0.0
        %1479 = vmatprep.subr.mxu0 0.0
        %1480 = vmatpush2.msra.mxu0 0.0
        %1481 = vmatprep.subr.mxu0 0.0
        %1482 = vmatpush2.msra.mxu0 0.0
        %1483 = vmatprep.subr.mxu0 0.0
        %1484 = vmatpush2.msra.mxu0 0.0
        %1485 = vmatprep.subr.mxu0 0.0
        %1486 = vmatpush2.msra.mxu0 0.0
        %1487 = vmatprep.subr.mxu0 0.0
        %1488 = vmatpush2.msra.mxu0 0.0
        %1489 = vmatprep.subr.mxu0 0.0
        %1490 = vmatpush2.msra.mxu0 0.0
        %1491 = vmatprep.subr.mxu0 0.0
        %1492 = vmatpush2.msra.mxu0 0.0
        %1493 = vmatprep.subr.mxu0 0.0
        %1494 = vmatpush2.msra.mxu0 0.0
        %1495 = vmatprep.subr.mxu0 0.0
        %1496 = vmatpush2.msra.mxu0 0.0
        %1497 = vmatprep.subr.mxu0 0.0
        %1498 = vmatpush2.msra.mxu0 0.0
        %1499 = vmatprep.subr.mxu0 0.0
        %1500 = vmatpush2.msra.mxu0 0.0
        %1501 = vmatprep.subr.mxu0 0.0
        %1502 = vmatpush2.msra.mxu0 0.0
        %1503 = vmatprep.subr.mxu0 0.0
        %1504 = vmatpush2.msra.mxu0 0.0
        %1505 = vmatprep.mubr.f32.mxu0 0.0
        %1506 = vmatmul.mubr.f32.gmra.mxu0 %v240
        %v1507 = vpop.f32.mrf.mxu0
        %v1508 = vadd.f32 %v235, %v1507
        %v1509 = vpop.f32.mrf.mxu0
        %1510 = vdwg.mxu0
        %v1511 = vxor.u32 %v1508, 2147483648
        %v1512 = vmul.f32 %v1511, 1.442695
        %v1513 = vpow.pop %v1512
        %v1514 = vadd.f32 %v1513, 1.0
        %v1515 = vrcp.pop %v1514
        %v1516 = vmul.f32 1.0, %v1515
        %1518 = vrot.lane.b32.xlu0 %v1516, 32
        %v1519 = vpop.permute.xlu0 %1518
        %v1521 = vmul.f32 %v1435, %v1519
        %1523 = vrot.lane.b32.xlu0 %v1521, 96
        %v1524 = vpop.permute.xlu0 %1523
        %v1525 = vsel %vm323, %v1524, 0
        %1527 = vmatprep.subr.mxu0 0.0
        %1528 = vmatpush1.msra.mxu0 0.0
        %1529 = vmatprep.subr.mxu0 0.0
        %1530 = vmatpush1.msra.mxu0 0.0
        %1531 = vmatprep.subr.mxu0 0.0
        %1532 = vmatpush1.msra.mxu0 0.0
        %1533 = vmatprep.subr.mxu0 0.0
        %1534 = vmatpush1.msra.mxu0 0.0
        %1535 = vmatprep.subr.mxu0 0.0
        %1536 = vmatpush1.msra.mxu0 0.0
        %1537 = vmatprep.subr.mxu0 0.0
        %1538 = vmatpush1.msra.mxu0 0.0
        %1539 = vmatprep.subr.mxu0 0.0
        %1540 = vmatpush1.msra.mxu0 0.0
        %1541 = vmatprep.subr.mxu0 0.0
        %1542 = vmatpush1.msra.mxu0 0.0
        %1543 = vmatprep.subr.mxu0 0.0
        %1544 = vmatpush1.msra.mxu0 0.0
        %1545 = vmatprep.subr.mxu0 0.0
        %1546 = vmatpush1.msra.mxu0 0.0
        %1547 = vmatprep.subr.mxu0 0.0
        %1548 = vmatpush1.msra.mxu0 0.0
        %1549 = vmatprep.subr.mxu0 0.0
        %1550 = vmatpush1.msra.mxu0 0.0
        %1551 = vmatprep.subr.mxu0 0.0
        %1552 = vmatpush1.msra.mxu0 %v230
        %1553 = vmatprep.subr.mxu0 0.0
        %1554 = vmatpush1.msra.mxu0 %v229
        %1555 = vmatprep.subr.mxu0 0.0
        %1556 = vmatpush1.msra.mxu0 %v228
        %1557 = vmatprep.subr.mxu0 0.0
        %1558 = vmatpush1.msra.mxu0 %v227
        %1559 = vmatprep.subr.mxu0 0.0
        %1560 = vmatpush2.msra.mxu0 0.0
        %1561 = vmatprep.subr.mxu0 0.0
        %1562 = vmatpush2.msra.mxu0 0.0
        %1563 = vmatprep.subr.mxu0 0.0
        %1564 = vmatpush2.msra.mxu0 0.0
        %1565 = vmatprep.subr.mxu0 0.0
        %1566 = vmatpush2.msra.mxu0 0.0
        %1567 = vmatprep.subr.mxu0 0.0
        %1568 = vmatpush2.msra.mxu0 0.0
        %1569 = vmatprep.subr.mxu0 0.0
        %1570 = vmatpush2.msra.mxu0 0.0
        %1571 = vmatprep.subr.mxu0 0.0
        %1572 = vmatpush2.msra.mxu0 0.0
        %1573 = vmatprep.subr.mxu0 0.0
        %1574 = vmatpush2.msra.mxu0 0.0
        %1575 = vmatprep.subr.mxu0 0.0
        %1576 = vmatpush2.msra.mxu0 0.0
        %1577 = vmatprep.subr.mxu0 0.0
        %1578 = vmatpush2.msra.mxu0 0.0
        %1579 = vmatprep.subr.mxu0 0.0
        %1580 = vmatpush2.msra.mxu0 0.0
        %1581 = vmatprep.subr.mxu0 0.0
        %1582 = vmatpush2.msra.mxu0 0.0
        %1583 = vmatprep.subr.mxu0 0.0
        %1584 = vmatpush2.msra.mxu0 0.0
        %1585 = vmatprep.subr.mxu0 0.0
        %1586 = vmatpush2.msra.mxu0 0.0
        %1587 = vmatprep.subr.mxu0 0.0
        %1588 = vmatpush2.msra.mxu0 0.0
        %1589 = vmatprep.subr.mxu0 0.0
        %1590 = vmatpush2.msra.mxu0 0.0
        %1591 = vmatprep.mubr.f32.mxu0 0.0
        %1592 = vmatmul.mubr.f32.gmra.mxu0 %v1525
        %v1593 = vpop.f32.mrf.mxu0
        %v1594 = vadd.f32 0.0, %v1593
        %v1595 = vpop.f32.mrf.mxu0
        %1596 = vdwg.mxu0
        %v1597 = vsel %vm323, %v1516, 0
        %1599 = vmatprep.subr.mxu0 0.0
        %1600 = vmatpush1.msra.mxu0 0.0
        %1601 = vmatprep.subr.mxu0 0.0
        %1602 = vmatpush1.msra.mxu0 0.0
        %1603 = vmatprep.subr.mxu0 0.0
        %1604 = vmatpush1.msra.mxu0 0.0
        %1605 = vmatprep.subr.mxu0 0.0
        %1606 = vmatpush1.msra.mxu0 0.0
        %1607 = vmatprep.subr.mxu0 0.0
        %1608 = vmatpush1.msra.mxu0 0.0
        %1609 = vmatprep.subr.mxu0 0.0
        %1610 = vmatpush1.msra.mxu0 0.0
        %1611 = vmatprep.subr.mxu0 0.0
        %1612 = vmatpush1.msra.mxu0 0.0
        %1613 = vmatprep.subr.mxu0 0.0
        %1614 = vmatpush1.msra.mxu0 0.0
        %1615 = vmatprep.subr.mxu0 0.0
        %1616 = vmatpush1.msra.mxu0 0.0
        %1617 = vmatprep.subr.mxu0 0.0
        %1618 = vmatpush1.msra.mxu0 0.0
        %1619 = vmatprep.subr.mxu0 0.0
        %1620 = vmatpush1.msra.mxu0 0.0
        %1621 = vmatprep.subr.mxu0 0.0
        %1622 = vmatpush1.msra.mxu0 0.0
        %1623 = vmatprep.subr.mxu0 0.0
        %1624 = vmatpush1.msra.mxu0 %v230
        %1625 = vmatprep.subr.mxu0 0.0
        %1626 = vmatpush1.msra.mxu0 %v229
        %1627 = vmatprep.subr.mxu0 0.0
        %1628 = vmatpush1.msra.mxu0 %v228
        %1629 = vmatprep.subr.mxu0 0.0
        %1630 = vmatpush1.msra.mxu0 %v227
        %1631 = vmatprep.subr.mxu0 0.0
        %1632 = vmatpush2.msra.mxu0 0.0
        %1633 = vmatprep.subr.mxu0 0.0
        %1634 = vmatpush2.msra.mxu0 0.0
        %1635 = vmatprep.subr.mxu0 0.0
        %1636 = vmatpush2.msra.mxu0 0.0
        %1637 = vmatprep.subr.mxu0 0.0
        %1638 = vmatpush2.msra.mxu0 0.0
        %1639 = vmatprep.subr.mxu0 0.0
        %1640 = vmatpush2.msra.mxu0 0.0
        %1641 = vmatprep.subr.mxu0 0.0
        %1642 = vmatpush2.msra.mxu0 0.0
        %1643 = vmatprep.subr.mxu0 0.0
        %1644 = vmatpush2.msra.mxu0 0.0
        %1645 = vmatprep.subr.mxu0 0.0
        %1646 = vmatpush2.msra.mxu0 0.0
        %1647 = vmatprep.subr.mxu0 0.0
        %1648 = vmatpush2.msra.mxu0 0.0
        %1649 = vmatprep.subr.mxu0 0.0
        %1650 = vmatpush2.msra.mxu0 0.0
        %1651 = vmatprep.subr.mxu0 0.0
        %1652 = vmatpush2.msra.mxu0 0.0
        %1653 = vmatprep.subr.mxu0 0.0
        %1654 = vmatpush2.msra.mxu0 0.0
        %1655 = vmatprep.subr.mxu0 0.0
        %1656 = vmatpush2.msra.mxu0 0.0
        %1657 = vmatprep.subr.mxu0 0.0
        %1658 = vmatpush2.msra.mxu0 0.0
        %1659 = vmatprep.subr.mxu0 0.0
        %1660 = vmatpush2.msra.mxu0 0.0
        %1661 = vmatprep.subr.mxu0 0.0
        %1662 = vmatpush2.msra.mxu0 0.0
        %1663 = vmatprep.mubr.f32.mxu0 0.0
        %1664 = vmatmul.mubr.f32.gmra.mxu0 %v1597
        %v1665 = vpop.f32.mrf.mxu0
        %v1666 = vadd.f32 0.0, %v1665
        %v1667 = vpop.f32.mrf.mxu0
        %1668 = vdwg.mxu0
        %v1669 = vrcp.pop %v1666
        %v1670 = vmul.f32 %v1594, %v1669
        %1672 = vrot.lane.b32.xlu0 %v1670, 40
        %v1673 = vpop.permute.xlu0 %1672
        %vm1675 = vcmask 388416
        %1676 = vst.msk [vmem:[%s215] sm:$0xf] %vm1675, %v1673
        %v1677 = vld [vmem:[%s224 + $0x4] sm:$0xf]
        %1679 = vrot.lane.b32.xlu0 %v1677, 64
        %v1680 = vpop.permute.xlu0 %1679
        %v1681 = vsel %vm242, %v1680, 0
        %1683 = vmatprep.subr.mxu0 0.0
        %1684 = vmatpush1.msra.mxu0 0.0
        %1685 = vmatprep.subr.mxu0 0.0
        %1686 = vmatpush1.msra.mxu0 0.0
        %1687 = vmatprep.subr.mxu0 0.0
        %1688 = vmatpush1.msra.mxu0 0.0
        %1689 = vmatprep.subr.mxu0 0.0
        %1690 = vmatpush1.msra.mxu0 0.0
        %1691 = vmatprep.subr.mxu0 0.0
        %1692 = vmatpush1.msra.mxu0 0.0
        %1693 = vmatprep.subr.mxu0 0.0
        %1694 = vmatpush1.msra.mxu0 0.0
        %1695 = vmatprep.subr.mxu0 0.0
        %1696 = vmatpush1.msra.mxu0 0.0
        %1697 = vmatprep.subr.mxu0 0.0
        %1698 = vmatpush1.msra.mxu0 0.0
        %1699 = vmatprep.subr.mxu0 0.0
        %1700 = vmatpush1.msra.mxu0 0.0
        %1701 = vmatprep.subr.mxu0 0.0
        %1702 = vmatpush1.msra.mxu0 0.0
        %1703 = vmatprep.subr.mxu0 0.0
        %1704 = vmatpush1.msra.mxu0 0.0
        %1705 = vmatprep.subr.mxu0 0.0
        %1706 = vmatpush1.msra.mxu0 0.0
        %1707 = vmatprep.subr.mxu0 0.0
        %1708 = vmatpush1.msra.mxu0 0.0
        %1709 = vmatprep.subr.mxu0 0.0
        %1710 = vmatpush1.msra.mxu0 0.0
        %1711 = vmatprep.subr.mxu0 0.0
        %1712 = vmatpush1.msra.mxu0 0.0
        %1713 = vmatprep.subr.mxu0 0.0
        %1714 = vmatpush1.msra.mxu0 %v1681
        %1715 = vmatprep.subr.mxu0 0.0
        %1716 = vmatpush2.msra.mxu0 0.0
        %1717 = vmatprep.subr.mxu0 0.0
        %1718 = vmatpush2.msra.mxu0 0.0
        %1719 = vmatprep.subr.mxu0 0.0
        %1720 = vmatpush2.msra.mxu0 0.0
        %1721 = vmatprep.subr.mxu0 0.0
        %1722 = vmatpush2.msra.mxu0 0.0
        %1723 = vmatprep.subr.mxu0 0.0
        %1724 = vmatpush2.msra.mxu0 0.0
        %1725 = vmatprep.subr.mxu0 0.0
        %1726 = vmatpush2.msra.mxu0 0.0
        %1727 = vmatprep.subr.mxu0 0.0
        %1728 = vmatpush2.msra.mxu0 0.0
        %1729 = vmatprep.subr.mxu0 0.0
        %1730 = vmatpush2.msra.mxu0 0.0
        %1731 = vmatprep.subr.mxu0 0.0
        %1732 = vmatpush2.msra.mxu0 0.0
        %1733 = vmatprep.subr.mxu0 0.0
        %1734 = vmatpush2.msra.mxu0 0.0
        %1735 = vmatprep.subr.mxu0 0.0
        %1736 = vmatpush2.msra.mxu0 0.0
        %1737 = vmatprep.subr.mxu0 0.0
        %1738 = vmatpush2.msra.mxu0 0.0
        %1739 = vmatprep.subr.mxu0 0.0
        %1740 = vmatpush2.msra.mxu0 0.0
        %1741 = vmatprep.subr.mxu0 0.0
        %1742 = vmatpush2.msra.mxu0 0.0
        %1743 = vmatprep.subr.mxu0 0.0
        %1744 = vmatpush2.msra.mxu0 0.0
        %1745 = vmatprep.subr.mxu0 0.0
        %1746 = vmatpush2.msra.mxu0 0.0
        %1747 = vmatprep.mubr.f32.mxu0 0.0
        %1748 = vmatmul.mubr.f32.gmra.mxu0 %v240
        %v1749 = vpop.f32.mrf.mxu0
        %v1750 = vadd.f32 %v235, %v1749
        %v1751 = vpop.f32.mrf.mxu0
        %1752 = vdwg.mxu0
        %v1753 = vxor.u32 %v1750, 2147483648
        %v1754 = vmul.f32 %v1753, 1.442695
        %v1755 = vpow.pop %v1754
        %v1756 = vadd.f32 %v1755, 1.0
        %v1757 = vrcp.pop %v1756
        %v1758 = vmul.f32 1.0, %v1757
        %1760 = vrot.lane.b32.xlu0 %v1758, 64
        %v1761 = vpop.permute.xlu0 %1760
        %v1763 = vmul.f32 %v1677, %v1761
        %1765 = vrot.lane.b32.xlu0 %v1763, 64
        %v1766 = vpop.permute.xlu0 %1765
        %v1767 = vsel %vm323, %v1766, 0
        %1769 = vmatprep.subr.mxu0 0.0
        %1770 = vmatpush1.msra.mxu0 0.0
        %1771 = vmatprep.subr.mxu0 0.0
        %1772 = vmatpush1.msra.mxu0 0.0
        %1773 = vmatprep.subr.mxu0 0.0
        %1774 = vmatpush1.msra.mxu0 0.0
        %1775 = vmatprep.subr.mxu0 0.0
        %1776 = vmatpush1.msra.mxu0 0.0
        %1777 = vmatprep.subr.mxu0 0.0
        %1778 = vmatpush1.msra.mxu0 0.0
        %1779 = vmatprep.subr.mxu0 0.0
        %1780 = vmatpush1.msra.mxu0 0.0
        %1781 = vmatprep.subr.mxu0 0.0
        %1782 = vmatpush1.msra.mxu0 0.0
        %1783 = vmatprep.subr.mxu0 0.0
        %1784 = vmatpush1.msra.mxu0 0.0
        %1785 = vmatprep.subr.mxu0 0.0
        %1786 = vmatpush1.msra.mxu0 0.0
        %1787 = vmatprep.subr.mxu0 0.0
        %1788 = vmatpush1.msra.mxu0 0.0
        %1789 = vmatprep.subr.mxu0 0.0
        %1790 = vmatpush1.msra.mxu0 0.0
        %1791 = vmatprep.subr.mxu0 0.0
        %1792 = vmatpush1.msra.mxu0 0.0
        %1793 = vmatprep.subr.mxu0 0.0
        %1794 = vmatpush1.msra.mxu0 %v230
        %1795 = vmatprep.subr.mxu0 0.0
        %1796 = vmatpush1.msra.mxu0 %v229
        %1797 = vmatprep.subr.mxu0 0.0
        %1798 = vmatpush1.msra.mxu0 %v228
        %1799 = vmatprep.subr.mxu0 0.0
        %1800 = vmatpush1.msra.mxu0 %v227
        %1801 = vmatprep.subr.mxu0 0.0
        %1802 = vmatpush2.msra.mxu0 0.0
        %1803 = vmatprep.subr.mxu0 0.0
        %1804 = vmatpush2.msra.mxu0 0.0
        %1805 = vmatprep.subr.mxu0 0.0
        %1806 = vmatpush2.msra.mxu0 0.0
        %1807 = vmatprep.subr.mxu0 0.0
        %1808 = vmatpush2.msra.mxu0 0.0
        %1809 = vmatprep.subr.mxu0 0.0
        %1810 = vmatpush2.msra.mxu0 0.0
        %1811 = vmatprep.subr.mxu0 0.0
        %1812 = vmatpush2.msra.mxu0 0.0
        %1813 = vmatprep.subr.mxu0 0.0
        %1814 = vmatpush2.msra.mxu0 0.0
        %1815 = vmatprep.subr.mxu0 0.0
        %1816 = vmatpush2.msra.mxu0 0.0
        %1817 = vmatprep.subr.mxu0 0.0
        %1818 = vmatpush2.msra.mxu0 0.0
        %1819 = vmatprep.subr.mxu0 0.0
        %1820 = vmatpush2.msra.mxu0 0.0
        %1821 = vmatprep.subr.mxu0 0.0
        %1822 = vmatpush2.msra.mxu0 0.0
        %1823 = vmatprep.subr.mxu0 0.0
        %1824 = vmatpush2.msra.mxu0 0.0
        %1825 = vmatprep.subr.mxu0 0.0
        %1826 = vmatpush2.msra.mxu0 0.0
        %1827 = vmatprep.subr.mxu0 0.0
        %1828 = vmatpush2.msra.mxu0 0.0
        %1829 = vmatprep.subr.mxu0 0.0
        %1830 = vmatpush2.msra.mxu0 0.0
        %1831 = vmatprep.subr.mxu0 0.0
        %1832 = vmatpush2.msra.mxu0 0.0
        %1833 = vmatprep.mubr.f32.mxu0 0.0
        %1834 = vmatmul.mubr.f32.gmra.mxu0 %v1767
        %v1835 = vpop.f32.mrf.mxu0
        %v1836 = vadd.f32 0.0, %v1835
        %v1837 = vpop.f32.mrf.mxu0
        %1838 = vdwg.mxu0
        %v1839 = vsel %vm323, %v1758, 0
        %1841 = vmatprep.subr.mxu0 0.0
        %1842 = vmatpush1.msra.mxu0 0.0
        %1843 = vmatprep.subr.mxu0 0.0
        %1844 = vmatpush1.msra.mxu0 0.0
        %1845 = vmatprep.subr.mxu0 0.0
        %1846 = vmatpush1.msra.mxu0 0.0
        %1847 = vmatprep.subr.mxu0 0.0
        %1848 = vmatpush1.msra.mxu0 0.0
        %1849 = vmatprep.subr.mxu0 0.0
        %1850 = vmatpush1.msra.mxu0 0.0
        %1851 = vmatprep.subr.mxu0 0.0
        %1852 = vmatpush1.msra.mxu0 0.0
        %1853 = vmatprep.subr.mxu0 0.0
        %1854 = vmatpush1.msra.mxu0 0.0
        %1855 = vmatprep.subr.mxu0 0.0
        %1856 = vmatpush1.msra.mxu0 0.0
        %1857 = vmatprep.subr.mxu0 0.0
        %1858 = vmatpush1.msra.mxu0 0.0
        %1859 = vmatprep.subr.mxu0 0.0
        %1860 = vmatpush1.msra.mxu0 0.0
        %1861 = vmatprep.subr.mxu0 0.0
        %1862 = vmatpush1.msra.mxu0 0.0
        %1863 = vmatprep.subr.mxu0 0.0
        %1864 = vmatpush1.msra.mxu0 0.0
        %1865 = vmatprep.subr.mxu0 0.0
        %1866 = vmatpush1.msra.mxu0 %v230
        %1867 = vmatprep.subr.mxu0 0.0
        %1868 = vmatpush1.msra.mxu0 %v229
        %1869 = vmatprep.subr.mxu0 0.0
        %1870 = vmatpush1.msra.mxu0 %v228
        %1871 = vmatprep.subr.mxu0 0.0
        %1872 = vmatpush1.msra.mxu0 %v227
        %1873 = vmatprep.subr.mxu0 0.0
        %1874 = vmatpush2.msra.mxu0 0.0
        %1875 = vmatprep.subr.mxu0 0.0
        %1876 = vmatpush2.msra.mxu0 0.0
        %1877 = vmatprep.subr.mxu0 0.0
        %1878 = vmatpush2.msra.mxu0 0.0
        %1879 = vmatprep.subr.mxu0 0.0
        %1880 = vmatpush2.msra.mxu0 0.0
        %1881 = vmatprep.subr.mxu0 0.0
        %1882 = vmatpush2.msra.mxu0 0.0
        %1883 = vmatprep.subr.mxu0 0.0
        %1884 = vmatpush2.msra.mxu0 0.0
        %1885 = vmatprep.subr.mxu0 0.0
        %1886 = vmatpush2.msra.mxu0 0.0
        %1887 = vmatprep.subr.mxu0 0.0
        %1888 = vmatpush2.msra.mxu0 0.0
        %1889 = vmatprep.subr.mxu0 0.0
        %1890 = vmatpush2.msra.mxu0 0.0
        %1891 = vmatprep.subr.mxu0 0.0
        %1892 = vmatpush2.msra.mxu0 0.0
        %1893 = vmatprep.subr.mxu0 0.0
        %1894 = vmatpush2.msra.mxu0 0.0
        %1895 = vmatprep.subr.mxu0 0.0
        %1896 = vmatpush2.msra.mxu0 0.0
        %1897 = vmatprep.subr.mxu0 0.0
        %1898 = vmatpush2.msra.mxu0 0.0
        %1899 = vmatprep.subr.mxu0 0.0
        %1900 = vmatpush2.msra.mxu0 0.0
        %1901 = vmatprep.subr.mxu0 0.0
        %1902 = vmatpush2.msra.mxu0 0.0
        %1903 = vmatprep.subr.mxu0 0.0
        %1904 = vmatpush2.msra.mxu0 0.0
        %1905 = vmatprep.mubr.f32.mxu0 0.0
        %1906 = vmatmul.mubr.f32.gmra.mxu0 %v1839
        %v1907 = vpop.f32.mrf.mxu0
        %v1908 = vadd.f32 0.0, %v1907
        %v1909 = vpop.f32.mrf.mxu0
        %1910 = vdwg.mxu0
        %v1911 = vrcp.pop %v1908
        %v1912 = vmul.f32 %v1836, %v1911
        %1914 = vrot.lane.b32.xlu0 %v1912, 48
        %v1915 = vpop.permute.xlu0 %1914
        %vm1917 = vcmask 454016
        %1918 = vst.msk [vmem:[%s215] sm:$0xf] %vm1917, %v1915
        %v1919 = vld [vmem:[%s224 + $0x4] sm:$0xf]
        %1921 = vrot.lane.b32.xlu0 %v1919, 32
        %v1922 = vpop.permute.xlu0 %1921
        %v1923 = vsel %vm242, %v1922, 0
        %1925 = vmatprep.subr.mxu0 0.0
        %1926 = vmatpush1.msra.mxu0 0.0
        %1927 = vmatprep.subr.mxu0 0.0
        %1928 = vmatpush1.msra.mxu0 0.0
        %1929 = vmatprep.subr.mxu0 0.0
        %1930 = vmatpush1.msra.mxu0 0.0
        %1931 = vmatprep.subr.mxu0 0.0
        %1932 = vmatpush1.msra.mxu0 0.0
        %1933 = vmatprep.subr.mxu0 0.0
        %1934 = vmatpush1.msra.mxu0 0.0
        %1935 = vmatprep.subr.mxu0 0.0
        %1936 = vmatpush1.msra.mxu0 0.0
        %1937 = vmatprep.subr.mxu0 0.0
        %1938 = vmatpush1.msra.mxu0 0.0
        %1939 = vmatprep.subr.mxu0 0.0
        %1940 = vmatpush1.msra.mxu0 0.0
        %1941 = vmatprep.subr.mxu0 0.0
        %1942 = vmatpush1.msra.mxu0 0.0
        %1943 = vmatprep.subr.mxu0 0.0
        %1944 = vmatpush1.msra.mxu0 0.0
        %1945 = vmatprep.subr.mxu0 0.0
        %1946 = vmatpush1.msra.mxu0 0.0
        %1947 = vmatprep.subr.mxu0 0.0
        %1948 = vmatpush1.msra.mxu0 0.0
        %1949 = vmatprep.subr.mxu0 0.0
        %1950 = vmatpush1.msra.mxu0 0.0
        %1951 = vmatprep.subr.mxu0 0.0
        %1952 = vmatpush1.msra.mxu0 0.0
        %1953 = vmatprep.subr.mxu0 0.0
        %1954 = vmatpush1.msra.mxu0 0.0
        %1955 = vmatprep.subr.mxu0 0.0
        %1956 = vmatpush1.msra.mxu0 %v1923
        %1957 = vmatprep.subr.mxu0 0.0
        %1958 = vmatpush2.msra.mxu0 0.0
        %1959 = vmatprep.subr.mxu0 0.0
        %1960 = vmatpush2.msra.mxu0 0.0
        %1961 = vmatprep.subr.mxu0 0.0
        %1962 = vmatpush2.msra.mxu0 0.0
        %1963 = vmatprep.subr.mxu0 0.0
        %1964 = vmatpush2.msra.mxu0 0.0
        %1965 = vmatprep.subr.mxu0 0.0
        %1966 = vmatpush2.msra.mxu0 0.0
        %1967 = vmatprep.subr.mxu0 0.0
        %1968 = vmatpush2.msra.mxu0 0.0
        %1969 = vmatprep.subr.mxu0 0.0
        %1970 = vmatpush2.msra.mxu0 0.0
        %1971 = vmatprep.subr.mxu0 0.0
        %1972 = vmatpush2.msra.mxu0 0.0
        %1973 = vmatprep.subr.mxu0 0.0
        %1974 = vmatpush2.msra.mxu0 0.0
        %1975 = vmatprep.subr.mxu0 0.0
        %1976 = vmatpush2.msra.mxu0 0.0
        %1977 = vmatprep.subr.mxu0 0.0
        %1978 = vmatpush2.msra.mxu0 0.0
        %1979 = vmatprep.subr.mxu0 0.0
        %1980 = vmatpush2.msra.mxu0 0.0
        %1981 = vmatprep.subr.mxu0 0.0
        %1982 = vmatpush2.msra.mxu0 0.0
        %1983 = vmatprep.subr.mxu0 0.0
        %1984 = vmatpush2.msra.mxu0 0.0
        %1985 = vmatprep.subr.mxu0 0.0
        %1986 = vmatpush2.msra.mxu0 0.0
        %1987 = vmatprep.subr.mxu0 0.0
        %1988 = vmatpush2.msra.mxu0 0.0
        %1989 = vmatprep.mubr.f32.mxu0 0.0
        %1990 = vmatmul.mubr.f32.gmra.mxu0 %v240
        %v1991 = vpop.f32.mrf.mxu0
        %v1992 = vadd.f32 %v235, %v1991
        %v1993 = vpop.f32.mrf.mxu0
        %1994 = vdwg.mxu0
        %v1995 = vxor.u32 %v1992, 2147483648
        %v1996 = vmul.f32 %v1995, 1.442695
        %v1997 = vpow.pop %v1996
        %v1998 = vadd.f32 %v1997, 1.0
        %v1999 = vrcp.pop %v1998
        %v2000 = vmul.f32 1.0, %v1999
        %2002 = vrot.lane.b32.xlu0 %v2000, 96
        %v2003 = vpop.permute.xlu0 %2002
        %v2005 = vmul.f32 %v1919, %v2003
        %2007 = vrot.lane.b32.xlu0 %v2005, 32
        %v2008 = vpop.permute.xlu0 %2007
        %v2009 = vsel %vm323, %v2008, 0
        %2011 = vmatprep.subr.mxu0 0.0
        %2012 = vmatpush1.msra.mxu0 0.0
        %2013 = vmatprep.subr.mxu0 0.0
        %2014 = vmatpush1.msra.mxu0 0.0
        %2015 = vmatprep.subr.mxu0 0.0
        %2016 = vmatpush1.msra.mxu0 0.0
        %2017 = vmatprep.subr.mxu0 0.0
        %2018 = vmatpush1.msra.mxu0 0.0
        %2019 = vmatprep.subr.mxu0 0.0
        %2020 = vmatpush1.msra.mxu0 0.0
        %2021 = vmatprep.subr.mxu0 0.0
        %2022 = vmatpush1.msra.mxu0 0.0
        %2023 = vmatprep.subr.mxu0 0.0
        %2024 = vmatpush1.msra.mxu0 0.0
        %2025 = vmatprep.subr.mxu0 0.0
        %2026 = vmatpush1.msra.mxu0 0.0
        %2027 = vmatprep.subr.mxu0 0.0
        %2028 = vmatpush1.msra.mxu0 0.0
        %2029 = vmatprep.subr.mxu0 0.0
        %2030 = vmatpush1.msra.mxu0 0.0
        %2031 = vmatprep.subr.mxu0 0.0
        %2032 = vmatpush1.msra.mxu0 0.0
        %2033 = vmatprep.subr.mxu0 0.0
        %2034 = vmatpush1.msra.mxu0 0.0
        %2035 = vmatprep.subr.mxu0 0.0
        %2036 = vmatpush1.msra.mxu0 %v230
        %2037 = vmatprep.subr.mxu0 0.0
        %2038 = vmatpush1.msra.mxu0 %v229
        %2039 = vmatprep.subr.mxu0 0.0
        %2040 = vmatpush1.msra.mxu0 %v228
        %2041 = vmatprep.subr.mxu0 0.0
        %2042 = vmatpush1.msra.mxu0 %v227
        %2043 = vmatprep.subr.mxu0 0.0
        %2044 = vmatpush2.msra.mxu0 0.0
        %2045 = vmatprep.subr.mxu0 0.0
        %2046 = vmatpush2.msra.mxu0 0.0
        %2047 = vmatprep.subr.mxu0 0.0
        %2048 = vmatpush2.msra.mxu0 0.0
        %2049 = vmatprep.subr.mxu0 0.0
        %2050 = vmatpush2.msra.mxu0 0.0
        %2051 = vmatprep.subr.mxu0 0.0
        %2052 = vmatpush2.msra.mxu0 0.0
        %2053 = vmatprep.subr.mxu0 0.0
        %2054 = vmatpush2.msra.mxu0 0.0
        %2055 = vmatprep.subr.mxu0 0.0
        %2056 = vmatpush2.msra.mxu0 0.0
        %2057 = vmatprep.subr.mxu0 0.0
        %2058 = vmatpush2.msra.mxu0 0.0
        %2059 = vmatprep.subr.mxu0 0.0
        %2060 = vmatpush2.msra.mxu0 0.0
        %2061 = vmatprep.subr.mxu0 0.0
        %2062 = vmatpush2.msra.mxu0 0.0
        %2063 = vmatprep.subr.mxu0 0.0
        %2064 = vmatpush2.msra.mxu0 0.0
        %2065 = vmatprep.subr.mxu0 0.0
        %2066 = vmatpush2.msra.mxu0 0.0
        %2067 = vmatprep.subr.mxu0 0.0
        %2068 = vmatpush2.msra.mxu0 0.0
        %2069 = vmatprep.subr.mxu0 0.0
        %2070 = vmatpush2.msra.mxu0 0.0
        %2071 = vmatprep.subr.mxu0 0.0
        %2072 = vmatpush2.msra.mxu0 0.0
        %2073 = vmatprep.subr.mxu0 0.0
        %2074 = vmatpush2.msra.mxu0 0.0
        %2075 = vmatprep.mubr.f32.mxu0 0.0
        %2076 = vmatmul.mubr.f32.gmra.mxu0 %v2009
        %v2077 = vpop.f32.mrf.mxu0
        %v2078 = vadd.f32 0.0, %v2077
        %v2079 = vpop.f32.mrf.mxu0
        %2080 = vdwg.mxu0
        %v2081 = vsel %vm323, %v2000, 0
        %2083 = vmatprep.subr.mxu0 0.0
        %2084 = vmatpush1.msra.mxu0 0.0
        %2085 = vmatprep.subr.mxu0 0.0
        %2086 = vmatpush1.msra.mxu0 0.0
        %2087 = vmatprep.subr.mxu0 0.0
        %2088 = vmatpush1.msra.mxu0 0.0
        %2089 = vmatprep.subr.mxu0 0.0
        %2090 = vmatpush1.msra.mxu0 0.0
        %2091 = vmatprep.subr.mxu0 0.0
        %2092 = vmatpush1.msra.mxu0 0.0
        %2093 = vmatprep.subr.mxu0 0.0
        %2094 = vmatpush1.msra.mxu0 0.0
        %2095 = vmatprep.subr.mxu0 0.0
        %2096 = vmatpush1.msra.mxu0 0.0
        %2097 = vmatprep.subr.mxu0 0.0
        %2098 = vmatpush1.msra.mxu0 0.0
        %2099 = vmatprep.subr.mxu0 0.0
        %2100 = vmatpush1.msra.mxu0 0.0
        %2101 = vmatprep.subr.mxu0 0.0
        %2102 = vmatpush1.msra.mxu0 0.0
        %2103 = vmatprep.subr.mxu0 0.0
        %2104 = vmatpush1.msra.mxu0 0.0
        %2105 = vmatprep.subr.mxu0 0.0
        %2106 = vmatpush1.msra.mxu0 0.0
        %2107 = vmatprep.subr.mxu0 0.0
        %2108 = vmatpush1.msra.mxu0 %v230
        %2109 = vmatprep.subr.mxu0 0.0
        %2110 = vmatpush1.msra.mxu0 %v229
        %2111 = vmatprep.subr.mxu0 0.0
        %2112 = vmatpush1.msra.mxu0 %v228
        %2113 = vmatprep.subr.mxu0 0.0
        %2114 = vmatpush1.msra.mxu0 %v227
        %2115 = vmatprep.subr.mxu0 0.0
        %2116 = vmatpush2.msra.mxu0 0.0
        %2117 = vmatprep.subr.mxu0 0.0
        %2118 = vmatpush2.msra.mxu0 0.0
        %2119 = vmatprep.subr.mxu0 0.0
        %2120 = vmatpush2.msra.mxu0 0.0
        %2121 = vmatprep.subr.mxu0 0.0
        %2122 = vmatpush2.msra.mxu0 0.0
        %2123 = vmatprep.subr.mxu0 0.0
        %2124 = vmatpush2.msra.mxu0 0.0
        %2125 = vmatprep.subr.mxu0 0.0
        %2126 = vmatpush2.msra.mxu0 0.0
        %2127 = vmatprep.subr.mxu0 0.0
        %2128 = vmatpush2.msra.mxu0 0.0
        %2129 = vmatprep.subr.mxu0 0.0
        %2130 = vmatpush2.msra.mxu0 0.0
        %2131 = vmatprep.subr.mxu0 0.0
        %2132 = vmatpush2.msra.mxu0 0.0
        %2133 = vmatprep.subr.mxu0 0.0
        %2134 = vmatpush2.msra.mxu0 0.0
        %2135 = vmatprep.subr.mxu0 0.0
        %2136 = vmatpush2.msra.mxu0 0.0
        %2137 = vmatprep.subr.mxu0 0.0
        %2138 = vmatpush2.msra.mxu0 0.0
        %2139 = vmatprep.subr.mxu0 0.0
        %2140 = vmatpush2.msra.mxu0 0.0
        %2141 = vmatprep.subr.mxu0 0.0
        %2142 = vmatpush2.msra.mxu0 0.0
        %2143 = vmatprep.subr.mxu0 0.0
        %2144 = vmatpush2.msra.mxu0 0.0
        %2145 = vmatprep.subr.mxu0 0.0
        %2146 = vmatpush2.msra.mxu0 0.0
        %2147 = vmatprep.mubr.f32.mxu0 0.0
        %2148 = vmatmul.mubr.f32.gmra.mxu0 %v2081
        %v2149 = vpop.f32.mrf.mxu0
        %v2150 = vadd.f32 0.0, %v2149
        %v2151 = vpop.f32.mrf.mxu0
        %2152 = vdwg.mxu0
        %v2153 = vrcp.pop %v2150
        %v2154 = vmul.f32 %v2078, %v2153
        %2156 = vrot.lane.b32.xlu0 %v2154, 56
        %v2157 = vpop.permute.xlu0 %2156
        %vm2159 = vcmask 519616
        %2160 = vst.msk [vmem:[%s215] sm:$0xf] %vm2159, %v2157
        %s2161 = sand.u32 %s131, 1
        %s2162 = scalar_lea.sflag [#allocation3], %s2161
        %s2163 = sand.u32 %s131, 1
        %s2164 = smul.addr %s2163, 4
        %s2165 = scalar_lea.vmem [#allocation2], %s2164
        // Predicated region
        $region37: #{tpu_custom_call.1} parent=35 // pred_check
          %p2166 = pneg %p141
        $region38: #{tpu_custom_call.1} parent=35 // pred_check_branch
          %2168 = sbr.rel (%p2166) target = $region40
        $region39: #{tpu_custom_call.1} parent=35 // pred_region
          %s2170 = ssub.s32 64, 64
          %2171 = vsyncadd %s2162, %s2170
          %s2172 = sadd.s32 %s23, %s22
          %s2173 = smul.addr %s2172, 64
          %s2174 = scalar_lea.hbm %s4, %s2173
          %s2176 = sshll.u32 %s2165, 4
          %s2177 = int_to_ptr.vmem [resolvable:$true] %s2176
          %2179 = dma.vmem_to_hbm [thread:$0]  %s2177, 64, %s2174, %s2162
        $region40: #{tpu_custom_call.1} parent=35 // pred_fallthru
          _
      $region36: #{tpu_custom_call.1} parent=5 // pred_fallthru
        _
      %p2180 = scmp.le.s32.totalorder 2, %s13
      // Predicated region
      $region41: #{tpu_custom_call.1} parent=5 // pred_check
        %p2181 = pneg %p2180
      $region42: #{tpu_custom_call.1} parent=5 // pred_check_branch
        %2183 = sbr.rel (%p2181) target = $region44
      $region43: #{tpu_custom_call.1} parent=5 // pred_region
        %s2184 = ssub.s32 %s13, 2
        // Predicated region
        $region45: #{tpu_custom_call.1} parent=43 // pred_check
          %p2185 = pneg %p147
        $region46: #{tpu_custom_call.1} parent=43 // pred_check_branch
          %2187 = sbr.rel (%p2185) target = $region48
        $region47: #{tpu_custom_call.1} parent=43 // pred_region
          %s2188 = sand.u32 %s132, 1
          %s2189 = scalar_lea.sflag [#allocation3], %s2188
          %s2190 = sand.u32 %s132, 1
          %s2191 = smul.addr %s2190, 4
          %s2192 = scalar_lea.vmem [#allocation2], %s2191
          %2193 = dma.done %s2189, 64
        $region48: #{tpu_custom_call.1} parent=43 // pred_fallthru
          _
      $region44: #{tpu_custom_call.1} parent=5 // pred_fallthru
        _
    $region6: #{tpu_custom_call.1} parent=1 // loop_footer
      %s17 = sadd.s32 1, %s13
    $region7: #{tpu_custom_call.1} parent=1 // loop_footer_branch
      %12 = sbr.rel target = $region3
    $region8: #{tpu_custom_call.1} parent=1 // loop_exit
      _
    %2194 = vsyncpa [#allocation3], 1
    %s2195 = scalar_lea.sflag [#allocation3], 1
    %2196 = vsyncpa %s2195, 1

</llo_original>
